<compile_context>
chip_gen: v5e
topology: v5e:2x2
jax: 0.10.0
libtpu: 0.0.40
codegen_flags: <defaults>
</compile_context>

<pallas_src>
import math

import jax
import jax.numpy as jnp
from jax import lax
from jax.experimental import pallas as pl
from jax.experimental.pallas import tpu as pltpu


def _sigmoid_via_tanh(v):
    # sigmoid(x) = 0.5*tanh(0.5*x) + 0.5 : one EUP push (vs exp + reciprocal).
    return 0.5 * jnp.tanh(0.5 * v) + 0.5


# Gate-slice width of the recurrent matmul: 2 gates (2H = 256 lanes) matches
# the 256x256 MXU of v6e/v7x; set to 1 (H = 128 lanes) on v5e's 128x128 MXU.
GATES_PER_SLICE = 2


def make_rnnet_kernel(T, B_TILE, H, D_in, unroll, gates_per_slice):
    """Pallas kernel with static T (seq len), B_TILE (batch tile), H (hidden)."""
    H4 = 4 * H
    n_slices = 4 // gates_per_slice
    slice_w = gates_per_slice * H
    nonlin = (_sigmoid_via_tanh, _sigmoid_via_tanh, jnp.tanh, _sigmoid_via_tanh)

    def kernel(x_ref, w_ih_ref, w_hh_ref, b_ref,
               w1_ref, b1_ref, w2_ref, b2_ref,
               out_ref, xp_ref):
        # ---- Hoisted input projection: ONE (T*B_TILE, D_in) x (D_in, 4H)
        # matmul (bf16 operands, f32 accumulation). No recurrent dependency;
        # the bias broadcast is hoisted out of the time loop too. The
        # leading-dim collapse is layout-free (B_TILE is a multiple of 16).
        x2 = x_ref[...].reshape(T * B_TILE, D_in)             # bf16
        xp = jnp.dot(x2, w_ih_ref[...], preferred_element_type=jnp.float32)
        xp_ref[...] = (xp + b_ref[...]).reshape(T, B_TILE, H4)
        # TODO(synk): at production T*B on v7x (64 MiB VMEM) store xp in bf16
        # or compute it in T-chunks instead of one resident f32 slab.

        def step(t, carry):
            h, c = carry
            hb = h.astype(jnp.bfloat16)      # bf16 MXU operand; gate math in f32
            x_t = xp_ref[t]                  # (B_TILE, 4H) f32, precomputed
            # Gate matmul split into independent slices, reading w_hh_ref
            # directly (no 64-vreg hoisted value): the EUP nonlinearity of
            # slice s can be scheduled under the MXU push of slice s+1.
            acts = [None] * 4
            for s in range(n_slices):
                lo = s * slice_w
                pre = (jnp.dot(hb, w_hh_ref[:, lo:lo + slice_w],
                               preferred_element_type=jnp.float32)
                       + x_t[:, lo:lo + slice_w])
                for j in range(gates_per_slice):
                    g = s * gates_per_slice + j
                    acts[g] = nonlin[g](pre[:, j * H:(j + 1) * H])
            i_g, f_g, g_g, o_g = acts        # PyTorch LSTM gate order i,f,g,o
            c_new = f_g * c + i_g * g_g
            h_new = o_g * jnp.tanh(c_new)
            # TODO(synk): nn.Dropout(rnn_dropout) on the hidden state is
            # identity in eval mode; training-mode dropout is not applied.
            return h_new, c_new

        h0 = jnp.zeros((B_TILE, H), jnp.float32)
        c0 = jnp.zeros((B_TILE, H), jnp.float32)
        # Strictly serial recurrence: unroll only removes loop overhead, so it
        # is capped (min(T, 8)) in the wrapper.
        h, _ = lax.fori_loop(0, T, step, (h0, c0), unroll=unroll)

        # ---- Dense head (H -> F1 -> F2_pad). Output lanes were padded to a
        # full 128-lane tile in the wrapper, so this is a lane-dense store.
        z1 = (jnp.dot(h.astype(jnp.bfloat16), w1_ref[...],
                      preferred_element_type=jnp.float32) + b1_ref[...])
        out_ref[...] = (jnp.dot(z1.astype(jnp.bfloat16), w2_ref[...],
                                preferred_element_type=jnp.float32) + b2_ref[...])

    return kernel


def _round_up(v, m):
    return (v + m - 1) // m * m


@jax.jit
def rnnet_forward(x, raw_params):
    """x: (B, C, T, num_bins) float32 -> (B, 1) float32."""
    w_ih, w_hh, b_ih, b_hh, w1, b1, w2, b2 = raw_params
    B, C, T, NB = x.shape
    D_in = C * NB
    H = w_hh.shape[1]
    H4 = 4 * H
    F1 = w1.shape[0]
    F2 = w2.shape[0]

    # Kernel-side packing: pre-transposed weights cast to bf16 (MXU operands,
    # f32 accumulation in-kernel), fused LSTM bias, 2-D f32 biases.
    w_ih_t = w_ih.T.astype(jnp.bfloat16)                  # (D_in, 4H)
    w_hh_t = w_hh.T.astype(jnp.bfloat16)                  # (H, 4H)
    b = (b_ih + b_hh)[None, :].astype(jnp.float32)        # (1, 4H)
    w1_t = w1.T.astype(jnp.bfloat16)                      # (H, F1)
    b1_2 = b1[None, :].astype(jnp.float32)                # (1, F1)
    # Pad the last dense layer out to a full 128-lane tile (unmasked vst).
    F2_pad = _round_up(max(F2, 128), 128)
    w2_t = jnp.pad(w2.T, ((0, 0), (0, F2_pad - F2))).astype(jnp.bfloat16)
    b2_2 = jnp.pad(b2[None, :], ((0, 0), (0, F2_pad - F2))).astype(jnp.float32)

    # (B,C,T,NB) -> (T,B,C*NB); flattening (C,NB) matches torch's
    # permute(0,2,1,3).view(B,T,C*NB) element order per (b, t) row.
    # TODO(synk): at production B*T*D_in this transpose is an extra HBM
    # round-trip; fold it into the producer or DMA per-T-chunk instead.
    x_seq = jnp.transpose(x, (2, 0, 1, 3)).reshape(T, B, D_in)

    # Batch tiling: tiles are multiples of 16 rows (bf16 sublane packing),
    # capped at 256 (MXU height on v6e/v7x). Padded rows are zeros: they
    # compute harmless finite garbage and are sliced off below. The tile axis
    # is a "parallel" grid dim (shards across v7x's two TensorCores).
    B_TILE = min(_round_up(B, 16), 256)
    B_pad = _round_up(B, B_TILE)
    if B_pad != B:
        x_seq = jnp.pad(x_seq, ((0, 0), (0, B_pad - B), (0, 0)))
    x_seq = x_seq.astype(jnp.bfloat16)                    # halves the x DMA too
    n_tiles = B_pad // B_TILE

    unroll = min(T, 8)
    kernel = make_rnnet_kernel(T, B_TILE, H, D_in, unroll, GATES_PER_SLICE)

    # VMEM budget from the actual footprint (double-buffered blocks + scratch).
    def nbytes(shape, dtype):
        return math.prod(shape) * jnp.dtype(dtype).itemsize
    blocks = (nbytes((T, B_TILE, D_in), jnp.bfloat16)
              + nbytes((D_in, H4), jnp.bfloat16) + nbytes((H, H4), jnp.bfloat16)
              + nbytes((1, H4), jnp.float32)
              + nbytes((H, F1), jnp.bfloat16) + nbytes((1, F1), jnp.float32)
              + nbytes((F1, F2_pad), jnp.bfloat16) + nbytes((1, F2_pad), jnp.float32)
              + nbytes((B_TILE, F2_pad), jnp.float32))
    scratch = nbytes((T, B_TILE, H4), jnp.float32)
    vmem_limit = min(_round_up(2 * blocks + scratch + (4 << 20), 1 << 20), 64 << 20)

    out = pl.pallas_call(
        kernel,
        out_shape=jax.ShapeDtypeStruct((B_pad, F2_pad), jnp.float32),
        grid_spec=pltpu.PrefetchScalarGridSpec(
            num_scalar_prefetch=0,
            grid=(n_tiles,),
            in_specs=[
                pl.BlockSpec((T, B_TILE, D_in), lambda i: (0, i, 0)),   # x
                pl.BlockSpec((D_in, H4), lambda i: (0, 0)),             # w_ih^T
                pl.BlockSpec((H, H4), lambda i: (0, 0)),                # w_hh^T
                pl.BlockSpec((1, H4), lambda i: (0, 0)),                # fused bias
                pl.BlockSpec((H, F1), lambda i: (0, 0)),                # w1^T
                pl.BlockSpec((1, F1), lambda i: (0, 0)),                # b1
                pl.BlockSpec((F1, F2_pad), lambda i: (0, 0)),           # w2^T (padded)
                pl.BlockSpec((1, F2_pad), lambda i: (0, 0)),            # b2 (padded)
            ],
            out_specs=pl.BlockSpec((B_TILE, F2_pad), lambda i: (i, 0)),
            scratch_shapes=[pltpu.VMEM((T, B_TILE, H4), jnp.float32)],  # hoisted xp
        ),
        compiler_params=pltpu.CompilerParams(
            dimension_semantics=("parallel",),
            vmem_limit_bytes=vmem_limit,
        ),
    )(x_seq, w_ih_t, w_hh_t, b, w1_t, b1_2, w2_t, b2_2)

    return out[:B, :F2]


def rnnet_ref(x, raw_params, mxu_bf16=False):
    """Pure-JAX reference. mxu_bf16=True mirrors the kernel's bf16 MXU operands
    + tanh-based sigmoid (tight check); False is exact f32 PyTorch-eval math."""
    w_ih, w_hh, b_ih, b_hh, w1, b1, w2, b2 = raw_params
    B, C, T, NB = x.shape
    H = w_hh.shape[1]
    cast = (lambda a: a.astype(jnp.bfloat16)) if mxu_bf16 else (lambda a: a)
    sig = _sigmoid_via_tanh if mxu_bf16 else jax.nn.sigmoid
    x_seq = jnp.transpose(x, (0, 2, 1, 3)).reshape(B, T, C * NB)
    h = jnp.zeros((B, H), jnp.float32)
    c = jnp.zeros((B, H), jnp.float32)
    for t in range(T):
        gates = (jnp.dot(cast(x_seq[:, t]), cast(w_ih.T),
                         preferred_element_type=jnp.float32)
                 + jnp.dot(cast(h), cast(w_hh.T),
                           preferred_element_type=jnp.float32)
                 + b_ih + b_hh)
        i_g = sig(gates[:, 0:H])
        f_g = sig(gates[:, H:2 * H])
        g_g = jnp.tanh(gates[:, 2 * H:3 * H])
        o_g = sig(gates[:, 3 * H:4 * H])
        c = f_g * c + i_g * g_g
        h = o_g * jnp.tanh(c)
    z = jnp.dot(cast(h), cast(w1.T), preferred_element_type=jnp.float32) + b1
    z = jnp.dot(cast(z), cast(w2.T), preferred_element_type=jnp.float32) + b2
    return z


def init_params(key, in_channels, num_bins, hidden_size, dense_features):
    """Deterministic synthetic init mirroring RNNet.initialize_weights()."""
    D_in = in_channels * num_bins
    H = hidden_size
    F1, F2 = dense_features
    ks = jax.random.split(key, 6)
    sqrt_k = math.sqrt(1.0 / H)
    w_ih = jax.random.uniform(ks[0], (4 * H, D_in), jnp.float32, -sqrt_k, sqrt_k)
    w_hh = jax.random.uniform(ks[1], (4 * H, H), jnp.float32, -sqrt_k, sqrt_k)
    b_ih = jax.random.uniform(ks[2], (4 * H,), jnp.float32, -sqrt_k, sqrt_k)
    b_hh = jax.random.uniform(ks[3], (4 * H,), jnp.float32, -sqrt_k, sqrt_k)
    # kaiming_uniform (fan_in, leaky_relu a=0 -> bound = sqrt(6/fan_in)), bias = 0
    bnd1 = math.sqrt(6.0 / H)
    w1 = jax.random.uniform(ks[4], (F1, H), jnp.float32, -bnd1, bnd1)
    b1 = jnp.zeros((F1,), jnp.float32)
    bnd2 = math.sqrt(6.0 / F1)
    w2 = jax.random.uniform(ks[5], (F2, F1), jnp.float32, -bnd2, bnd2)
    b2 = jnp.zeros((F2,), jnp.float32)
    return (w_ih, w_hh, b_ih, b_hh, w1, b1, w2, b2)


if __name__ == "__main__":
    # small shapes: batch=4, in_channels=4, seq=8, num_bins=32 -> LSTM input 128
    B, C, T, NB = 4, 4, 8, 32
    H = 128
    dense_features = (256, 1)

    key = jax.random.PRNGKey(0)
    kx, kp = jax.random.split(key)
    x = jax.random.normal(kx, (B, C, T, NB), jnp.float32)
    raw_params = init_params(kp, C, NB, H, dense_features)

    out = jax.block_until_ready(rnnet_forward(x, raw_params))
    assert out.shape == (B, 1), out.shape

    # Tight check vs a reference mirroring the kernel's bf16 MXU operands;
    # loose check vs exact f32 PyTorch-eval semantics (bf16 operands cost
    # ~1e-3..1e-2 absolute after T recurrent steps).
    ref_mirror = rnnet_ref(x, raw_params, mxu_bf16=True)
    ref_f32 = rnnet_ref(x, raw_params, mxu_bf16=False)
    assert jnp.allclose(out, ref_mirror, rtol=2e-3, atol=2e-3), (out, ref_mirror)
    assert jnp.allclose(out, ref_f32, rtol=5e-2, atol=5e-2), (out, ref_f32)

    print("KERNEL_OK")
</pallas_src>

<mosaic_0001>
module attributes {stable_mosaic.version = 11 : i64} {
  func.func @kernel(%arg0: i32, %arg1: memref<8x16x128xbf16, #tpu.memory_space<vmem>>, %arg2: memref<128x512xbf16, #tpu.memory_space<vmem>>, %arg3: memref<128x512xbf16, #tpu.memory_space<vmem>>, %arg4: memref<1x512xf32, #tpu.memory_space<vmem>>, %arg5: memref<128x256xbf16, #tpu.memory_space<vmem>>, %arg6: memref<1x256xf32, #tpu.memory_space<vmem>>, %arg7: memref<256x128xbf16, #tpu.memory_space<vmem>>, %arg8: memref<1x128xf32, #tpu.memory_space<vmem>>, %arg9: memref<16x128xf32, #tpu.memory_space<vmem>>, %arg10: memref<8x16x512xf32, #tpu.memory_space<vmem>>) attributes {dimension_semantics = [#tpu.dimension_semantics<parallel>], iteration_bounds = array<i64: 1>, scalar_prefetch = 0 : i64, scratch_operands = 1 : i64, tpu.core_type = #tpu.core_type<tc>, window_params = [{transform_indices = @transform_0, window_bounds = array<i64: 8, 16, 128>}, {pipeline_mode = #tpu.pipeline_mode<synchronous>, transform_indices = @transform_1, window_bounds = array<i64: 128, 512>}, {pipeline_mode = #tpu.pipeline_mode<synchronous>, transform_indices = @transform_2, window_bounds = array<i64: 128, 512>}, {pipeline_mode = #tpu.pipeline_mode<synchronous>, transform_indices = @transform_3, window_bounds = array<i64: 1, 512>}, {pipeline_mode = #tpu.pipeline_mode<synchronous>, transform_indices = @transform_4, window_bounds = array<i64: 128, 256>}, {pipeline_mode = #tpu.pipeline_mode<synchronous>, transform_indices = @transform_5, window_bounds = array<i64: 1, 256>}, {pipeline_mode = #tpu.pipeline_mode<synchronous>, transform_indices = @transform_6, window_bounds = array<i64: 256, 128>}, {pipeline_mode = #tpu.pipeline_mode<synchronous>, transform_indices = @transform_7, window_bounds = array<i64: 1, 128>}, {transform_indices = @transform_8, window_bounds = array<i64: 16, 128>}]} {
    %c0 = arith.constant 0 : index
    %c0_0 = arith.constant 0 : index
    %c0_1 = arith.constant 0 : index
    %0 = vector.load %arg1[%c0, %c0_0, %c0_1] : memref<8x16x128xbf16, #tpu.memory_space<vmem>>, vector<8x16x128xbf16>
    %1 = vector.shape_cast %0 : vector<8x16x128xbf16> to vector<128x128xbf16>
    %c0_2 = arith.constant 0 : index
    %c0_3 = arith.constant 0 : index
    %2 = vector.load %arg2[%c0_2, %c0_3] : memref<128x512xbf16, #tpu.memory_space<vmem>>, vector<128x512xbf16>
    %cst = arith.constant dense<0.000000e+00> : vector<128x512xf32>
    %3 = tpu.matmul %1, %2, %cst {dimension_numbers = #tpu.dot_dimension_numbers<[1], [0], [0], [1], [0, 0, 1, 1], [], []>} : vector<128x128xbf16>, vector<128x512xbf16>, vector<128x512xf32> -> vector<128x512xf32>
    %c0_4 = arith.constant 0 : index
    %c0_5 = arith.constant 0 : index
    %4 = vector.load %arg4[%c0_4, %c0_5] : memref<1x512xf32, #tpu.memory_space<vmem>>, vector<1x512xf32>
    %5 = vector.broadcast %4 : vector<1x512xf32> to vector<128x512xf32>
    %6 = arith.addf %3, %5 : vector<128x512xf32>
    %7 = vector.shape_cast %6 : vector<128x512xf32> to vector<8x16x512xf32>
    %c0_6 = arith.constant 0 : index
    %c0_7 = arith.constant 0 : index
    %c0_8 = arith.constant 0 : index
    %8 = vector.load %arg10[%c0_6, %c0_7, %c0_8] : memref<8x16x512xf32, #tpu.memory_space<vmem>>, vector<8x16x512xf32>
    tpu.vector_store %arg10[%c0_6, %c0_7, %c0_8], %7 {strides = array<i32>} : memref<8x16x512xf32, #tpu.memory_space<vmem>>, vector<8x16x512xf32>,
    %cst_9 = arith.constant 0.000000e+00 : f32
    %9 = vector.broadcast %cst_9 : f32 to vector<16x128xf32>
    %cst_10 = arith.constant 0.000000e+00 : f32
    %10 = vector.broadcast %cst_10 : f32 to vector<16x128xf32>
    %c0_i32 = arith.constant 0 : i32
    %11 = arith.truncf %9 : vector<16x128xf32> to vector<16x128xbf16>
    %12 = arith.index_cast %c0_i32 : i32 to index
    %c0_11 = arith.constant 0 : index
    %c0_12 = arith.constant 0 : index
    %13 = vector.load %arg10[%12, %c0_11, %c0_12] : memref<8x16x512xf32, #tpu.memory_space<vmem>>, vector<1x16x512xf32>
    %14 = vector.shape_cast %13 : vector<1x16x512xf32> to vector<16x512xf32>
    %c0_13 = arith.constant 0 : index
    %c0_14 = arith.constant 0 : index
    %15 = vector.load %arg3[%c0_13, %c0_14] : memref<128x512xbf16, #tpu.memory_space<vmem>>, vector<128x256xbf16>
    %cst_15 = arith.constant dense<0.000000e+00> : vector<16x256xf32>
    %16 = tpu.matmul %11, %15, %cst_15 {dimension_numbers = #tpu.dot_dimension_numbers<[1], [0], [0], [1], [0, 0, 1, 1], [], []>} : vector<16x128xbf16>, vector<128x256xbf16>, vector<16x256xf32> -> vector<16x256xf32>
    %17 = vector.extract_strided_slice %14 {offsets = [0, 0], sizes = [16, 256], strides = [1, 1]} : vector<16x512xf32> to vector<16x256xf32>
    %18 = arith.addf %16, %17 : vector<16x256xf32>
    %19 = vector.extract_strided_slice %18 {offsets = [0, 0], sizes = [16, 128], strides = [1, 1]} : vector<16x256xf32> to vector<16x128xf32>
    %cst_16 = arith.constant 5.000000e-01 : f32
    %20 = vector.broadcast %cst_16 : f32 to vector<16x128xf32>
    %21 = arith.mulf %20, %19 : vector<16x128xf32>
    %22 = math.tanh %21 : vector<16x128xf32>
    %cst_17 = arith.constant 5.000000e-01 : f32
    %23 = vector.broadcast %cst_17 : f32 to vector<16x128xf32>
    %24 = arith.mulf %23, %22 : vector<16x128xf32>
    %cst_18 = arith.constant 5.000000e-01 : f32
    %25 = vector.broadcast %cst_18 : f32 to vector<16x128xf32>
    %26 = arith.addf %24, %25 : vector<16x128xf32>
    %27 = vector.extract_strided_slice %18 {offsets = [0, 128], sizes = [16, 128], strides = [1, 1]} : vector<16x256xf32> to vector<16x128xf32>
    %cst_19 = arith.constant 5.000000e-01 : f32
    %28 = vector.broadcast %cst_19 : f32 to vector<16x128xf32>
    %29 = arith.mulf %28, %27 : vector<16x128xf32>
    %30 = math.tanh %29 : vector<16x128xf32>
    %cst_20 = arith.constant 5.000000e-01 : f32
    %31 = vector.broadcast %cst_20 : f32 to vector<16x128xf32>
    %32 = arith.mulf %31, %30 : vector<16x128xf32>
    %cst_21 = arith.constant 5.000000e-01 : f32
    %33 = vector.broadcast %cst_21 : f32 to vector<16x128xf32>
    %34 = arith.addf %32, %33 : vector<16x128xf32>
    %c0_22 = arith.constant 0 : index
    %c256 = arith.constant 256 : index
    %35 = vector.load %arg3[%c0_22, %c256] : memref<128x512xbf16, #tpu.memory_space<vmem>>, vector<128x256xbf16>
    %cst_23 = arith.constant dense<0.000000e+00> : vector<16x256xf32>
    %36 = tpu.matmul %11, %35, %cst_23 {dimension_numbers = #tpu.dot_dimension_numbers<[1], [0], [0], [1], [0, 0, 1, 1], [], []>} : vector<16x128xbf16>, vector<128x256xbf16>, vector<16x256xf32> -> vector<16x256xf32>
    %37 = vector.extract_strided_slice %14 {offsets = [0, 256], sizes = [16, 256], strides = [1, 1]} : vector<16x512xf32> to vector<16x256xf32>
    %38 = arith.addf %36, %37 : vector<16x256xf32>
    %39 = vector.extract_strided_slice %38 {offsets = [0, 0], sizes = [16, 128], strides = [1, 1]} : vector<16x256xf32> to vector<16x128xf32>
    %40 = math.tanh %39 : vector<16x128xf32>
    %41 = vector.extract_strided_slice %38 {offsets = [0, 128], sizes = [16, 128], strides = [1, 1]} : vector<16x256xf32> to vector<16x128xf32>
    %cst_24 = arith.constant 5.000000e-01 : f32
    %42 = vector.broadcast %cst_24 : f32 to vector<16x128xf32>
    %43 = arith.mulf %42, %41 : vector<16x128xf32>
    %44 = math.tanh %43 : vector<16x128xf32>
    %cst_25 = arith.constant 5.000000e-01 : f32
    %45 = vector.broadcast %cst_25 : f32 to vector<16x128xf32>
    %46 = arith.mulf %45, %44 : vector<16x128xf32>
    %cst_26 = arith.constant 5.000000e-01 : f32
    %47 = vector.broadcast %cst_26 : f32 to vector<16x128xf32>
    %48 = arith.addf %46, %47 : vector<16x128xf32>
    %49 = arith.mulf %34, %10 : vector<16x128xf32>
    %50 = arith.mulf %26, %40 : vector<16x128xf32>
    %51 = arith.addf %49, %50 : vector<16x128xf32>
    %52 = math.tanh %51 : vector<16x128xf32>
    %53 = arith.mulf %48, %52 : vector<16x128xf32>
    %c1_i32 = arith.constant 1 : i32
    %54 = arith.truncf %53 : vector<16x128xf32> to vector<16x128xbf16>
    %55 = arith.index_cast %c1_i32 : i32 to index
    %c0_27 = arith.constant 0 : index
    %c0_28 = arith.constant 0 : index
    %56 = vector.load %arg10[%55, %c0_27, %c0_28] : memref<8x16x512xf32, #tpu.memory_space<vmem>>, vector<1x16x512xf32>
    %57 = vector.shape_cast %56 : vector<1x16x512xf32> to vector<16x512xf32>
    %c0_29 = arith.constant 0 : index
    %c0_30 = arith.constant 0 : index
    %58 = vector.load %arg3[%c0_29, %c0_30] : memref<128x512xbf16, #tpu.memory_space<vmem>>, vector<128x256xbf16>
    %cst_31 = arith.constant dense<0.000000e+00> : vector<16x256xf32>
    %59 = tpu.matmul %54, %58, %cst_31 {dimension_numbers = #tpu.dot_dimension_numbers<[1], [0], [0], [1], [0, 0, 1, 1], [], []>} : vector<16x128xbf16>, vector<128x256xbf16>, vector<16x256xf32> -> vector<16x256xf32>
    %60 = vector.extract_strided_slice %57 {offsets = [0, 0], sizes = [16, 256], strides = [1, 1]} : vector<16x512xf32> to vector<16x256xf32>
    %61 = arith.addf %59, %60 : vector<16x256xf32>
    %62 = vector.extract_strided_slice %61 {offsets = [0, 0], sizes = [16, 128], strides = [1, 1]} : vector<16x256xf32> to vector<16x128xf32>
    %cst_32 = arith.constant 5.000000e-01 : f32
    %63 = vector.broadcast %cst_32 : f32 to vector<16x128xf32>
    %64 = arith.mulf %63, %62 : vector<16x128xf32>
    %65 = math.tanh %64 : vector<16x128xf32>
    %cst_33 = arith.constant 5.000000e-01 : f32
    %66 = vector.broadcast %cst_33 : f32 to vector<16x128xf32>
    %67 = arith.mulf %66, %65 : vector<16x128xf32>
    %cst_34 = arith.constant 5.000000e-01 : f32
    %68 = vector.broadcast %cst_34 : f32 to vector<16x128xf32>
    %69 = arith.addf %67, %68 : vector<16x128xf32>
    %70 = vector.extract_strided_slice %61 {offsets = [0, 128], sizes = [16, 128], strides = [1, 1]} : vector<16x256xf32> to vector<16x128xf32>
    %cst_35 = arith.constant 5.000000e-01 : f32
    %71 = vector.broadcast %cst_35 : f32 to vector<16x128xf32>
    %72 = arith.mulf %71, %70 : vector<16x128xf32>
    %73 = math.tanh %72 : vector<16x128xf32>
    %cst_36 = arith.constant 5.000000e-01 : f32
    %74 = vector.broadcast %cst_36 : f32 to vector<16x128xf32>
    %75 = arith.mulf %74, %73 : vector<16x128xf32>
    %cst_37 = arith.constant 5.000000e-01 : f32
    %76 = vector.broadcast %cst_37 : f32 to vector<16x128xf32>
    %77 = arith.addf %75, %76 : vector<16x128xf32>
    %c0_38 = arith.constant 0 : index
    %c256_39 = arith.constant 256 : index
    %78 = vector.load %arg3[%c0_38, %c256_39] : memref<128x512xbf16, #tpu.memory_space<vmem>>, vector<128x256xbf16>
    %cst_40 = arith.constant dense<0.000000e+00> : vector<16x256xf32>
    %79 = tpu.matmul %54, %78, %cst_40 {dimension_numbers = #tpu.dot_dimension_numbers<[1], [0], [0], [1], [0, 0, 1, 1], [], []>} : vector<16x128xbf16>, vector<128x256xbf16>, vector<16x256xf32> -> vector<16x256xf32>
    %80 = vector.extract_strided_slice %57 {offsets = [0, 256], sizes = [16, 256], strides = [1, 1]} : vector<16x512xf32> to vector<16x256xf32>
    %81 = arith.addf %79, %80 : vector<16x256xf32>
    %82 = vector.extract_strided_slice %81 {offsets = [0, 0], sizes = [16, 128], strides = [1, 1]} : vector<16x256xf32> to vector<16x128xf32>
    %83 = math.tanh %82 : vector<16x128xf32>
    %84 = vector.extract_strided_slice %81 {offsets = [0, 128], sizes = [16, 128], strides = [1, 1]} : vector<16x256xf32> to vector<16x128xf32>
    %cst_41 = arith.constant 5.000000e-01 : f32
    %85 = vector.broadcast %cst_41 : f32 to vector<16x128xf32>
    %86 = arith.mulf %85, %84 : vector<16x128xf32>
    %87 = math.tanh %86 : vector<16x128xf32>
    %cst_42 = arith.constant 5.000000e-01 : f32
    %88 = vector.broadcast %cst_42 : f32 to vector<16x128xf32>
    %89 = arith.mulf %88, %87 : vector<16x128xf32>
    %cst_43 = arith.constant 5.000000e-01 : f32
    %90 = vector.broadcast %cst_43 : f32 to vector<16x128xf32>
    %91 = arith.addf %89, %90 : vector<16x128xf32>
    %92 = arith.mulf %77, %51 : vector<16x128xf32>
    %93 = arith.mulf %69, %83 : vector<16x128xf32>
    %94 = arith.addf %92, %93 : vector<16x128xf32>
    %95 = math.tanh %94 : vector<16x128xf32>
    %96 = arith.mulf %91, %95 : vector<16x128xf32>
    %c2_i32 = arith.constant 2 : i32
    %97 = arith.truncf %96 : vector<16x128xf32> to vector<16x128xbf16>
    %98 = arith.index_cast %c2_i32 : i32 to index
    %c0_44 = arith.constant 0 : index
    %c0_45 = arith.constant 0 : index
    %99 = vector.load %arg10[%98, %c0_44, %c0_45] : memref<8x16x512xf32, #tpu.memory_space<vmem>>, vector<1x16x512xf32>
    %100 = vector.shape_cast %99 : vector<1x16x512xf32> to vector<16x512xf32>
    %c0_46 = arith.constant 0 : index
    %c0_47 = arith.constant 0 : index
    %101 = vector.load %arg3[%c0_46, %c0_47] : memref<128x512xbf16, #tpu.memory_space<vmem>>, vector<128x256xbf16>
    %cst_48 = arith.constant dense<0.000000e+00> : vector<16x256xf32>
    %102 = tpu.matmul %97, %101, %cst_48 {dimension_numbers = #tpu.dot_dimension_numbers<[1], [0], [0], [1], [0, 0, 1, 1], [], []>} : vector<16x128xbf16>, vector<128x256xbf16>, vector<16x256xf32> -> vector<16x256xf32>
    %103 = vector.extract_strided_slice %100 {offsets = [0, 0], sizes = [16, 256], strides = [1, 1]} : vector<16x512xf32> to vector<16x256xf32>
    %104 = arith.addf %102, %103 : vector<16x256xf32>
    %105 = vector.extract_strided_slice %104 {offsets = [0, 0], sizes = [16, 128], strides = [1, 1]} : vector<16x256xf32> to vector<16x128xf32>
    %cst_49 = arith.constant 5.000000e-01 : f32
    %106 = vector.broadcast %cst_49 : f32 to vector<16x128xf32>
    %107 = arith.mulf %106, %105 : vector<16x128xf32>
    %108 = math.tanh %107 : vector<16x128xf32>
    %cst_50 = arith.constant 5.000000e-01 : f32
    %109 = vector.broadcast %cst_50 : f32 to vector<16x128xf32>
    %110 = arith.mulf %109, %108 : vector<16x128xf32>
    %cst_51 = arith.constant 5.000000e-01 : f32
    %111 = vector.broadcast %cst_51 : f32 to vector<16x128xf32>
    %112 = arith.addf %110, %111 : vector<16x128xf32>
    %113 = vector.extract_strided_slice %104 {offsets = [0, 128], sizes = [16, 128], strides = [1, 1]} : vector<16x256xf32> to vector<16x128xf32>
    %cst_52 = arith.constant 5.000000e-01 : f32
    %114 = vector.broadcast %cst_52 : f32 to vector<16x128xf32>
    %115 = arith.mulf %114, %113 : vector<16x128xf32>
    %116 = math.tanh %115 : vector<16x128xf32>
    %cst_53 = arith.constant 5.000000e-01 : f32
    %117 = vector.broadcast %cst_53 : f32 to vector<16x128xf32>
    %118 = arith.mulf %117, %116 : vector<16x128xf32>
    %cst_54 = arith.constant 5.000000e-01 : f32
    %119 = vector.broadcast %cst_54 : f32 to vector<16x128xf32>
    %120 = arith.addf %118, %119 : vector<16x128xf32>
    %c0_55 = arith.constant 0 : index
    %c256_56 = arith.constant 256 : index
    %121 = vector.load %arg3[%c0_55, %c256_56] : memref<128x512xbf16, #tpu.memory_space<vmem>>, vector<128x256xbf16>
    %cst_57 = arith.constant dense<0.000000e+00> : vector<16x256xf32>
    %122 = tpu.matmul %97, %121, %cst_57 {dimension_numbers = #tpu.dot_dimension_numbers<[1], [0], [0], [1], [0, 0, 1, 1], [], []>} : vector<16x128xbf16>, vector<128x256xbf16>, vector<16x256xf32> -> vector<16x256xf32>
    %123 = vector.extract_strided_slice %100 {offsets = [0, 256], sizes = [16, 256], strides = [1, 1]} : vector<16x512xf32> to vector<16x256xf32>
    %124 = arith.addf %122, %123 : vector<16x256xf32>
    %125 = vector.extract_strided_slice %124 {offsets = [0, 0], sizes = [16, 128], strides = [1, 1]} : vector<16x256xf32> to vector<16x128xf32>
    %126 = math.tanh %125 : vector<16x128xf32>
    %127 = vector.extract_strided_slice %124 {offsets = [0, 128], sizes = [16, 128], strides = [1, 1]} : vector<16x256xf32> to vector<16x128xf32>
    %cst_58 = arith.constant 5.000000e-01 : f32
    %128 = vector.broadcast %cst_58 : f32 to vector<16x128xf32>
    %129 = arith.mulf %128, %127 : vector<16x128xf32>
    %130 = math.tanh %129 : vector<16x128xf32>
    %cst_59 = arith.constant 5.000000e-01 : f32
    %131 = vector.broadcast %cst_59 : f32 to vector<16x128xf32>
    %132 = arith.mulf %131, %130 : vector<16x128xf32>
    %cst_60 = arith.constant 5.000000e-01 : f32
    %133 = vector.broadcast %cst_60 : f32 to vector<16x128xf32>
    %134 = arith.addf %132, %133 : vector<16x128xf32>
    %135 = arith.mulf %120, %94 : vector<16x128xf32>
    %136 = arith.mulf %112, %126 : vector<16x128xf32>
    %137 = arith.addf %135, %136 : vector<16x128xf32>
    %138 = math.tanh %137 : vector<16x128xf32>
    %139 = arith.mulf %134, %138 : vector<16x128xf32>
    %c3_i32 = arith.constant 3 : i32
    %140 = arith.truncf %139 : vector<16x128xf32> to vector<16x128xbf16>
    %141 = arith.index_cast %c3_i32 : i32 to index
    %c0_61 = arith.constant 0 : index
    %c0_62 = arith.constant 0 : index
    %142 = vector.load %arg10[%141, %c0_61, %c0_62] : memref<8x16x512xf32, #tpu.memory_space<vmem>>, vector<1x16x512xf32>
    %143 = vector.shape_cast %142 : vector<1x16x512xf32> to vector<16x512xf32>
    %c0_63 = arith.constant 0 : index
    %c0_64 = arith.constant 0 : index
    %144 = vector.load %arg3[%c0_63, %c0_64] : memref<128x512xbf16, #tpu.memory_space<vmem>>, vector<128x256xbf16>
    %cst_65 = arith.constant dense<0.000000e+00> : vector<16x256xf32>
    %145 = tpu.matmul %140, %144, %cst_65 {dimension_numbers = #tpu.dot_dimension_numbers<[1], [0], [0], [1], [0, 0, 1, 1], [], []>} : vector<16x128xbf16>, vector<128x256xbf16>, vector<16x256xf32> -> vector<16x256xf32>
    %146 = vector.extract_strided_slice %143 {offsets = [0, 0], sizes = [16, 256], strides = [1, 1]} : vector<16x512xf32> to vector<16x256xf32>
    %147 = arith.addf %145, %146 : vector<16x256xf32>
    %148 = vector.extract_strided_slice %147 {offsets = [0, 0], sizes = [16, 128], strides = [1, 1]} : vector<16x256xf32> to vector<16x128xf32>
    %cst_66 = arith.constant 5.000000e-01 : f32
    %149 = vector.broadcast %cst_66 : f32 to vector<16x128xf32>
    %150 = arith.mulf %149, %148 : vector<16x128xf32>
    %151 = math.tanh %150 : vector<16x128xf32>
    %cst_67 = arith.constant 5.000000e-01 : f32
    %152 = vector.broadcast %cst_67 : f32 to vector<16x128xf32>
    %153 = arith.mulf %152, %151 : vector<16x128xf32>
    %cst_68 = arith.constant 5.000000e-01 : f32
    %154 = vector.broadcast %cst_68 : f32 to vector<16x128xf32>
    %155 = arith.addf %153, %154 : vector<16x128xf32>
    %156 = vector.extract_strided_slice %147 {offsets = [0, 128], sizes = [16, 128], strides = [1, 1]} : vector<16x256xf32> to vector<16x128xf32>
    %cst_69 = arith.constant 5.000000e-01 : f32
    %157 = vector.broadcast %cst_69 : f32 to vector<16x128xf32>
    %158 = arith.mulf %157, %156 : vector<16x128xf32>
    %159 = math.tanh %158 : vector<16x128xf32>
    %cst_70 = arith.constant 5.000000e-01 : f32
    %160 = vector.broadcast %cst_70 : f32 to vector<16x128xf32>
    %161 = arith.mulf %160, %159 : vector<16x128xf32>
    %cst_71 = arith.constant 5.000000e-01 : f32
    %162 = vector.broadcast %cst_71 : f32 to vector<16x128xf32>
    %163 = arith.addf %161, %162 : vector<16x128xf32>
    %c0_72 = arith.constant 0 : index
    %c256_73 = arith.constant 256 : index
    %164 = vector.load %arg3[%c0_72, %c256_73] : memref<128x512xbf16, #tpu.memory_space<vmem>>, vector<128x256xbf16>
    %cst_74 = arith.constant dense<0.000000e+00> : vector<16x256xf32>
    %165 = tpu.matmul %140, %164, %cst_74 {dimension_numbers = #tpu.dot_dimension_numbers<[1], [0], [0], [1], [0, 0, 1, 1], [], []>} : vector<16x128xbf16>, vector<128x256xbf16>, vector<16x256xf32> -> vector<16x256xf32>
    %166 = vector.extract_strided_slice %143 {offsets = [0, 256], sizes = [16, 256], strides = [1, 1]} : vector<16x512xf32> to vector<16x256xf32>
    %167 = arith.addf %165, %166 : vector<16x256xf32>
    %168 = vector.extract_strided_slice %167 {offsets = [0, 0], sizes = [16, 128], strides = [1, 1]} : vector<16x256xf32> to vector<16x128xf32>
    %169 = math.tanh %168 : vector<16x128xf32>
    %170 = vector.extract_strided_slice %167 {offsets = [0, 128], sizes = [16, 128], strides = [1, 1]} : vector<16x256xf32> to vector<16x128xf32>
    %cst_75 = arith.constant 5.000000e-01 : f32
    %171 = vector.broadcast %cst_75 : f32 to vector<16x128xf32>
    %172 = arith.mulf %171, %170 : vector<16x128xf32>
    %173 = math.tanh %172 : vector<16x128xf32>
    %cst_76 = arith.constant 5.000000e-01 : f32
    %174 = vector.broadcast %cst_76 : f32 to vector<16x128xf32>
    %175 = arith.mulf %174, %173 : vector<16x128xf32>
    %cst_77 = arith.constant 5.000000e-01 : f32
    %176 = vector.broadcast %cst_77 : f32 to vector<16x128xf32>
    %177 = arith.addf %175, %176 : vector<16x128xf32>
    %178 = arith.mulf %163, %137 : vector<16x128xf32>
    %179 = arith.mulf %155, %169 : vector<16x128xf32>
    %180 = arith.addf %178, %179 : vector<16x128xf32>
    %181 = math.tanh %180 : vector<16x128xf32>
    %182 = arith.mulf %177, %181 : vector<16x128xf32>
    %c4_i32 = arith.constant 4 : i32
    %183 = arith.truncf %182 : vector<16x128xf32> to vector<16x128xbf16>
    %184 = arith.index_cast %c4_i32 : i32 to index
    %c0_78 = arith.constant 0 : index
    %c0_79 = arith.constant 0 : index
    %185 = vector.load %arg10[%184, %c0_78, %c0_79] : memref<8x16x512xf32, #tpu.memory_space<vmem>>, vector<1x16x512xf32>
    %186 = vector.shape_cast %185 : vector<1x16x512xf32> to vector<16x512xf32>
    %c0_80 = arith.constant 0 : index
    %c0_81 = arith.constant 0 : index
    %187 = vector.load %arg3[%c0_80, %c0_81] : memref<128x512xbf16, #tpu.memory_space<vmem>>, vector<128x256xbf16>
    %cst_82 = arith.constant dense<0.000000e+00> : vector<16x256xf32>
    %188 = tpu.matmul %183, %187, %cst_82 {dimension_numbers = #tpu.dot_dimension_numbers<[1], [0], [0], [1], [0, 0, 1, 1], [], []>} : vector<16x128xbf16>, vector<128x256xbf16>, vector<16x256xf32> -> vector<16x256xf32>
    %189 = vector.extract_strided_slice %186 {offsets = [0, 0], sizes = [16, 256], strides = [1, 1]} : vector<16x512xf32> to vector<16x256xf32>
    %190 = arith.addf %188, %189 : vector<16x256xf32>
    %191 = vector.extract_strided_slice %190 {offsets = [0, 0], sizes = [16, 128], strides = [1, 1]} : vector<16x256xf32> to vector<16x128xf32>
    %cst_83 = arith.constant 5.000000e-01 : f32
    %192 = vector.broadcast %cst_83 : f32 to vector<16x128xf32>
    %193 = arith.mulf %192, %191 : vector<16x128xf32>
    %194 = math.tanh %193 : vector<16x128xf32>
    %cst_84 = arith.constant 5.000000e-01 : f32
    %195 = vector.broadcast %cst_84 : f32 to vector<16x128xf32>
    %196 = arith.mulf %195, %194 : vector<16x128xf32>
    %cst_85 = arith.constant 5.000000e-01 : f32
    %197 = vector.broadcast %cst_85 : f32 to vector<16x128xf32>
    %198 = arith.addf %196, %197 : vector<16x128xf32>
    %199 = vector.extract_strided_slice %190 {offsets = [0, 128], sizes = [16, 128], strides = [1, 1]} : vector<16x256xf32> to vector<16x128xf32>
    %cst_86 = arith.constant 5.000000e-01 : f32
    %200 = vector.broadcast %cst_86 : f32 to vector<16x128xf32>
    %201 = arith.mulf %200, %199 : vector<16x128xf32>
    %202 = math.tanh %201 : vector<16x128xf32>
    %cst_87 = arith.constant 5.000000e-01 : f32
    %203 = vector.broadcast %cst_87 : f32 to vector<16x128xf32>
    %204 = arith.mulf %203, %202 : vector<16x128xf32>
    %cst_88 = arith.constant 5.000000e-01 : f32
    %205 = vector.broadcast %cst_88 : f32 to vector<16x128xf32>
    %206 = arith.addf %204, %205 : vector<16x128xf32>
    %c0_89 = arith.constant 0 : index
    %c256_90 = arith.constant 256 : index
    %207 = vector.load %arg3[%c0_89, %c256_90] : memref<128x512xbf16, #tpu.memory_space<vmem>>, vector<128x256xbf16>
    %cst_91 = arith.constant dense<0.000000e+00> : vector<16x256xf32>
    %208 = tpu.matmul %183, %207, %cst_91 {dimension_numbers = #tpu.dot_dimension_numbers<[1], [0], [0], [1], [0, 0, 1, 1], [], []>} : vector<16x128xbf16>, vector<128x256xbf16>, vector<16x256xf32> -> vector<16x256xf32>
    %209 = vector.extract_strided_slice %186 {offsets = [0, 256], sizes = [16, 256], strides = [1, 1]} : vector<16x512xf32> to vector<16x256xf32>
    %210 = arith.addf %208, %209 : vector<16x256xf32>
    %211 = vector.extract_strided_slice %210 {offsets = [0, 0], sizes = [16, 128], strides = [1, 1]} : vector<16x256xf32> to vector<16x128xf32>
    %212 = math.tanh %211 : vector<16x128xf32>
    %213 = vector.extract_strided_slice %210 {offsets = [0, 128], sizes = [16, 128], strides = [1, 1]} : vector<16x256xf32> to vector<16x128xf32>
    %cst_92 = arith.constant 5.000000e-01 : f32
    %214 = vector.broadcast %cst_92 : f32 to vector<16x128xf32>
    %215 = arith.mulf %214, %213 : vector<16x128xf32>
    %216 = math.tanh %215 : vector<16x128xf32>
    %cst_93 = arith.constant 5.000000e-01 : f32
    %217 = vector.broadcast %cst_93 : f32 to vector<16x128xf32>
    %218 = arith.mulf %217, %216 : vector<16x128xf32>
    %cst_94 = arith.constant 5.000000e-01 : f32
    %219 = vector.broadcast %cst_94 : f32 to vector<16x128xf32>
    %220 = arith.addf %218, %219 : vector<16x128xf32>
    %221 = arith.mulf %206, %180 : vector<16x128xf32>
    %222 = arith.mulf %198, %212 : vector<16x128xf32>
    %223 = arith.addf %221, %222 : vector<16x128xf32>
    %224 = math.tanh %223 : vector<16x128xf32>
    %225 = arith.mulf %220, %224 : vector<16x128xf32>
    %c5_i32 = arith.constant 5 : i32
    %226 = arith.truncf %225 : vector<16x128xf32> to vector<16x128xbf16>
    %227 = arith.index_cast %c5_i32 : i32 to index
    %c0_95 = arith.constant 0 : index
    %c0_96 = arith.constant 0 : index
    %228 = vector.load %arg10[%227, %c0_95, %c0_96] : memref<8x16x512xf32, #tpu.memory_space<vmem>>, vector<1x16x512xf32>
    %229 = vector.shape_cast %228 : vector<1x16x512xf32> to vector<16x512xf32>
    %c0_97 = arith.constant 0 : index
    %c0_98 = arith.constant 0 : index
    %230 = vector.load %arg3[%c0_97, %c0_98] : memref<128x512xbf16, #tpu.memory_space<vmem>>, vector<128x256xbf16>
    %cst_99 = arith.constant dense<0.000000e+00> : vector<16x256xf32>
    %231 = tpu.matmul %226, %230, %cst_99 {dimension_numbers = #tpu.dot_dimension_numbers<[1], [0], [0], [1], [0, 0, 1, 1], [], []>} : vector<16x128xbf16>, vector<128x256xbf16>, vector<16x256xf32> -> vector<16x256xf32>
    %232 = vector.extract_strided_slice %229 {offsets = [0, 0], sizes = [16, 256], strides = [1, 1]} : vector<16x512xf32> to vector<16x256xf32>
    %233 = arith.addf %231, %232 : vector<16x256xf32>
    %234 = vector.extract_strided_slice %233 {offsets = [0, 0], sizes = [16, 128], strides = [1, 1]} : vector<16x256xf32> to vector<16x128xf32>
    %cst_100 = arith.constant 5.000000e-01 : f32
    %235 = vector.broadcast %cst_100 : f32 to vector<16x128xf32>
    %236 = arith.mulf %235, %234 : vector<16x128xf32>
    %237 = math.tanh %236 : vector<16x128xf32>
    %cst_101 = arith.constant 5.000000e-01 : f32
    %238 = vector.broadcast %cst_101 : f32 to vector<16x128xf32>
    %239 = arith.mulf %238, %237 : vector<16x128xf32>
    %cst_102 = arith.constant 5.000000e-01 : f32
    %240 = vector.broadcast %cst_102 : f32 to vector<16x128xf32>
    %241 = arith.addf %239, %240 : vector<16x128xf32>
    %242 = vector.extract_strided_slice %233 {offsets = [0, 128], sizes = [16, 128], strides = [1, 1]} : vector<16x256xf32> to vector<16x128xf32>
    %cst_103 = arith.constant 5.000000e-01 : f32
    %243 = vector.broadcast %cst_103 : f32 to vector<16x128xf32>
    %244 = arith.mulf %243, %242 : vector<16x128xf32>
    %245 = math.tanh %244 : vector<16x128xf32>
    %cst_104 = arith.constant 5.000000e-01 : f32
    %246 = vector.broadcast %cst_104 : f32 to vector<16x128xf32>
    %247 = arith.mulf %246, %245 : vector<16x128xf32>
    %cst_105 = arith.constant 5.000000e-01 : f32
    %248 = vector.broadcast %cst_105 : f32 to vector<16x128xf32>
    %249 = arith.addf %247, %248 : vector<16x128xf32>
    %c0_106 = arith.constant 0 : index
    %c256_107 = arith.constant 256 : index
    %250 = vector.load %arg3[%c0_106, %c256_107] : memref<128x512xbf16, #tpu.memory_space<vmem>>, vector<128x256xbf16>
    %cst_108 = arith.constant dense<0.000000e+00> : vector<16x256xf32>
    %251 = tpu.matmul %226, %250, %cst_108 {dimension_numbers = #tpu.dot_dimension_numbers<[1], [0], [0], [1], [0, 0, 1, 1], [], []>} : vector<16x128xbf16>, vector<128x256xbf16>, vector<16x256xf32> -> vector<16x256xf32>
    %252 = vector.extract_strided_slice %229 {offsets = [0, 256], sizes = [16, 256], strides = [1, 1]} : vector<16x512xf32> to vector<16x256xf32>
    %253 = arith.addf %251, %252 : vector<16x256xf32>
    %254 = vector.extract_strided_slice %253 {offsets = [0, 0], sizes = [16, 128], strides = [1, 1]} : vector<16x256xf32> to vector<16x128xf32>
    %255 = math.tanh %254 : vector<16x128xf32>
    %256 = vector.extract_strided_slice %253 {offsets = [0, 128], sizes = [16, 128], strides = [1, 1]} : vector<16x256xf32> to vector<16x128xf32>
    %cst_109 = arith.constant 5.000000e-01 : f32
    %257 = vector.broadcast %cst_109 : f32 to vector<16x128xf32>
    %258 = arith.mulf %257, %256 : vector<16x128xf32>
    %259 = math.tanh %258 : vector<16x128xf32>
    %cst_110 = arith.constant 5.000000e-01 : f32
    %260 = vector.broadcast %cst_110 : f32 to vector<16x128xf32>
    %261 = arith.mulf %260, %259 : vector<16x128xf32>
    %cst_111 = arith.constant 5.000000e-01 : f32
    %262 = vector.broadcast %cst_111 : f32 to vector<16x128xf32>
    %263 = arith.addf %261, %262 : vector<16x128xf32>
    %264 = arith.mulf %249, %223 : vector<16x128xf32>
    %265 = arith.mulf %241, %255 : vector<16x128xf32>
    %266 = arith.addf %264, %265 : vector<16x128xf32>
    %267 = math.tanh %266 : vector<16x128xf32>
    %268 = arith.mulf %263, %267 : vector<16x128xf32>
    %c6_i32 = arith.constant 6 : i32
    %269 = arith.truncf %268 : vector<16x128xf32> to vector<16x128xbf16>
    %270 = arith.index_cast %c6_i32 : i32 to index
    %c0_112 = arith.constant 0 : index
    %c0_113 = arith.constant 0 : index
    %271 = vector.load %arg10[%270, %c0_112, %c0_113] : memref<8x16x512xf32, #tpu.memory_space<vmem>>, vector<1x16x512xf32>
    %272 = vector.shape_cast %271 : vector<1x16x512xf32> to vector<16x512xf32>
    %c0_114 = arith.constant 0 : index
    %c0_115 = arith.constant 0 : index
    %273 = vector.load %arg3[%c0_114, %c0_115] : memref<128x512xbf16, #tpu.memory_space<vmem>>, vector<128x256xbf16>
    %cst_116 = arith.constant dense<0.000000e+00> : vector<16x256xf32>
    %274 = tpu.matmul %269, %273, %cst_116 {dimension_numbers = #tpu.dot_dimension_numbers<[1], [0], [0], [1], [0, 0, 1, 1], [], []>} : vector<16x128xbf16>, vector<128x256xbf16>, vector<16x256xf32> -> vector<16x256xf32>
    %275 = vector.extract_strided_slice %272 {offsets = [0, 0], sizes = [16, 256], strides = [1, 1]} : vector<16x512xf32> to vector<16x256xf32>
    %276 = arith.addf %274, %275 : vector<16x256xf32>
    %277 = vector.extract_strided_slice %276 {offsets = [0, 0], sizes = [16, 128], strides = [1, 1]} : vector<16x256xf32> to vector<16x128xf32>
    %cst_117 = arith.constant 5.000000e-01 : f32
    %278 = vector.broadcast %cst_117 : f32 to vector<16x128xf32>
    %279 = arith.mulf %278, %277 : vector<16x128xf32>
    %280 = math.tanh %279 : vector<16x128xf32>
    %cst_118 = arith.constant 5.000000e-01 : f32
    %281 = vector.broadcast %cst_118 : f32 to vector<16x128xf32>
    %282 = arith.mulf %281, %280 : vector<16x128xf32>
    %cst_119 = arith.constant 5.000000e-01 : f32
    %283 = vector.broadcast %cst_119 : f32 to vector<16x128xf32>
    %284 = arith.addf %282, %283 : vector<16x128xf32>
    %285 = vector.extract_strided_slice %276 {offsets = [0, 128], sizes = [16, 128], strides = [1, 1]} : vector<16x256xf32> to vector<16x128xf32>
    %cst_120 = arith.constant 5.000000e-01 : f32
    %286 = vector.broadcast %cst_120 : f32 to vector<16x128xf32>
    %287 = arith.mulf %286, %285 : vector<16x128xf32>
    %288 = math.tanh %287 : vector<16x128xf32>
    %cst_121 = arith.constant 5.000000e-01 : f32
    %289 = vector.broadcast %cst_121 : f32 to vector<16x128xf32>
    %290 = arith.mulf %289, %288 : vector<16x128xf32>
    %cst_122 = arith.constant 5.000000e-01 : f32
    %291 = vector.broadcast %cst_122 : f32 to vector<16x128xf32>
    %292 = arith.addf %290, %291 : vector<16x128xf32>
    %c0_123 = arith.constant 0 : index
    %c256_124 = arith.constant 256 : index
    %293 = vector.load %arg3[%c0_123, %c256_124] : memref<128x512xbf16, #tpu.memory_space<vmem>>, vector<128x256xbf16>
    %cst_125 = arith.constant dense<0.000000e+00> : vector<16x256xf32>
    %294 = tpu.matmul %269, %293, %cst_125 {dimension_numbers = #tpu.dot_dimension_numbers<[1], [0], [0], [1], [0, 0, 1, 1], [], []>} : vector<16x128xbf16>, vector<128x256xbf16>, vector<16x256xf32> -> vector<16x256xf32>
    %295 = vector.extract_strided_slice %272 {offsets = [0, 256], sizes = [16, 256], strides = [1, 1]} : vector<16x512xf32> to vector<16x256xf32>
    %296 = arith.addf %294, %295 : vector<16x256xf32>
    %297 = vector.extract_strided_slice %296 {offsets = [0, 0], sizes = [16, 128], strides = [1, 1]} : vector<16x256xf32> to vector<16x128xf32>
    %298 = math.tanh %297 : vector<16x128xf32>
    %299 = vector.extract_strided_slice %296 {offsets = [0, 128], sizes = [16, 128], strides = [1, 1]} : vector<16x256xf32> to vector<16x128xf32>
    %cst_126 = arith.constant 5.000000e-01 : f32
    %300 = vector.broadcast %cst_126 : f32 to vector<16x128xf32>
    %301 = arith.mulf %300, %299 : vector<16x128xf32>
    %302 = math.tanh %301 : vector<16x128xf32>
    %cst_127 = arith.constant 5.000000e-01 : f32
    %303 = vector.broadcast %cst_127 : f32 to vector<16x128xf32>
    %304 = arith.mulf %303, %302 : vector<16x128xf32>
    %cst_128 = arith.constant 5.000000e-01 : f32
    %305 = vector.broadcast %cst_128 : f32 to vector<16x128xf32>
    %306 = arith.addf %304, %305 : vector<16x128xf32>
    %307 = arith.mulf %292, %266 : vector<16x128xf32>
    %308 = arith.mulf %284, %298 : vector<16x128xf32>
    %309 = arith.addf %307, %308 : vector<16x128xf32>
    %310 = math.tanh %309 : vector<16x128xf32>
    %311 = arith.mulf %306, %310 : vector<16x128xf32>
    %c7_i32 = arith.constant 7 : i32
    %312 = arith.truncf %311 : vector<16x128xf32> to vector<16x128xbf16>
    %313 = arith.index_cast %c7_i32 : i32 to index
    %c0_129 = arith.constant 0 : index
    %c0_130 = arith.constant 0 : index
    %314 = vector.load %arg10[%313, %c0_129, %c0_130] : memref<8x16x512xf32, #tpu.memory_space<vmem>>, vector<1x16x512xf32>
    %315 = vector.shape_cast %314 : vector<1x16x512xf32> to vector<16x512xf32>
    %c0_131 = arith.constant 0 : index
    %c0_132 = arith.constant 0 : index
    %316 = vector.load %arg3[%c0_131, %c0_132] : memref<128x512xbf16, #tpu.memory_space<vmem>>, vector<128x256xbf16>
    %cst_133 = arith.constant dense<0.000000e+00> : vector<16x256xf32>
    %317 = tpu.matmul %312, %316, %cst_133 {dimension_numbers = #tpu.dot_dimension_numbers<[1], [0], [0], [1], [0, 0, 1, 1], [], []>} : vector<16x128xbf16>, vector<128x256xbf16>, vector<16x256xf32> -> vector<16x256xf32>
    %318 = vector.extract_strided_slice %315 {offsets = [0, 0], sizes = [16, 256], strides = [1, 1]} : vector<16x512xf32> to vector<16x256xf32>
    %319 = arith.addf %317, %318 : vector<16x256xf32>
    %320 = vector.extract_strided_slice %319 {offsets = [0, 0], sizes = [16, 128], strides = [1, 1]} : vector<16x256xf32> to vector<16x128xf32>
    %cst_134 = arith.constant 5.000000e-01 : f32
    %321 = vector.broadcast %cst_134 : f32 to vector<16x128xf32>
    %322 = arith.mulf %321, %320 : vector<16x128xf32>
    %323 = math.tanh %322 : vector<16x128xf32>
    %cst_135 = arith.constant 5.000000e-01 : f32
    %324 = vector.broadcast %cst_135 : f32 to vector<16x128xf32>
    %325 = arith.mulf %324, %323 : vector<16x128xf32>
    %cst_136 = arith.constant 5.000000e-01 : f32
    %326 = vector.broadcast %cst_136 : f32 to vector<16x128xf32>
    %327 = arith.addf %325, %326 : vector<16x128xf32>
    %328 = vector.extract_strided_slice %319 {offsets = [0, 128], sizes = [16, 128], strides = [1, 1]} : vector<16x256xf32> to vector<16x128xf32>
    %cst_137 = arith.constant 5.000000e-01 : f32
    %329 = vector.broadcast %cst_137 : f32 to vector<16x128xf32>
    %330 = arith.mulf %329, %328 : vector<16x128xf32>
    %331 = math.tanh %330 : vector<16x128xf32>
    %cst_138 = arith.constant 5.000000e-01 : f32
    %332 = vector.broadcast %cst_138 : f32 to vector<16x128xf32>
    %333 = arith.mulf %332, %331 : vector<16x128xf32>
    %cst_139 = arith.constant 5.000000e-01 : f32
    %334 = vector.broadcast %cst_139 : f32 to vector<16x128xf32>
    %335 = arith.addf %333, %334 : vector<16x128xf32>
    %c0_140 = arith.constant 0 : index
    %c256_141 = arith.constant 256 : index
    %336 = vector.load %arg3[%c0_140, %c256_141] : memref<128x512xbf16, #tpu.memory_space<vmem>>, vector<128x256xbf16>
    %cst_142 = arith.constant dense<0.000000e+00> : vector<16x256xf32>
    %337 = tpu.matmul %312, %336, %cst_142 {dimension_numbers = #tpu.dot_dimension_numbers<[1], [0], [0], [1], [0, 0, 1, 1], [], []>} : vector<16x128xbf16>, vector<128x256xbf16>, vector<16x256xf32> -> vector<16x256xf32>
    %338 = vector.extract_strided_slice %315 {offsets = [0, 256], sizes = [16, 256], strides = [1, 1]} : vector<16x512xf32> to vector<16x256xf32>
    %339 = arith.addf %337, %338 : vector<16x256xf32>
    %340 = vector.extract_strided_slice %339 {offsets = [0, 0], sizes = [16, 128], strides = [1, 1]} : vector<16x256xf32> to vector<16x128xf32>
    %341 = math.tanh %340 : vector<16x128xf32>
    %342 = vector.extract_strided_slice %339 {offsets = [0, 128], sizes = [16, 128], strides = [1, 1]} : vector<16x256xf32> to vector<16x128xf32>
    %cst_143 = arith.constant 5.000000e-01 : f32
    %343 = vector.broadcast %cst_143 : f32 to vector<16x128xf32>
    %344 = arith.mulf %343, %342 : vector<16x128xf32>
    %345 = math.tanh %344 : vector<16x128xf32>
    %cst_144 = arith.constant 5.000000e-01 : f32
    %346 = vector.broadcast %cst_144 : f32 to vector<16x128xf32>
    %347 = arith.mulf %346, %345 : vector<16x128xf32>
    %cst_145 = arith.constant 5.000000e-01 : f32
    %348 = vector.broadcast %cst_145 : f32 to vector<16x128xf32>
    %349 = arith.addf %347, %348 : vector<16x128xf32>
    %350 = arith.mulf %335, %309 : vector<16x128xf32>
    %351 = arith.mulf %327, %341 : vector<16x128xf32>
    %352 = arith.addf %350, %351 : vector<16x128xf32>
    %353 = math.tanh %352 : vector<16x128xf32>
    %354 = arith.mulf %349, %353 : vector<16x128xf32>
    %c8_i32 = arith.constant 8 : i32
    %355 = arith.truncf %354 : vector<16x128xf32> to vector<16x128xbf16>
    %c0_146 = arith.constant 0 : index
    %c0_147 = arith.constant 0 : index
    %356 = vector.load %arg5[%c0_146, %c0_147] : memref<128x256xbf16, #tpu.memory_space<vmem>>, vector<128x256xbf16>
    %cst_148 = arith.constant dense<0.000000e+00> : vector<16x256xf32>
    %357 = tpu.matmul %355, %356, %cst_148 {dimension_numbers = #tpu.dot_dimension_numbers<[1], [0], [0], [1], [0, 0, 1, 1], [], []>} : vector<16x128xbf16>, vector<128x256xbf16>, vector<16x256xf32> -> vector<16x256xf32>
    %c0_149 = arith.constant 0 : index
    %c0_150 = arith.constant 0 : index
    %358 = vector.load %arg6[%c0_149, %c0_150] : memref<1x256xf32, #tpu.memory_space<vmem>>, vector<1x256xf32>
    %359 = vector.broadcast %358 : vector<1x256xf32> to vector<16x256xf32>
    %360 = arith.addf %357, %359 : vector<16x256xf32>
    %361 = arith.truncf %360 : vector<16x256xf32> to vector<16x256xbf16>
    %c0_151 = arith.constant 0 : index
    %c0_152 = arith.constant 0 : index
    %362 = vector.load %arg7[%c0_151, %c0_152] : memref<256x128xbf16, #tpu.memory_space<vmem>>, vector<256x128xbf16>
    %cst_153 = arith.constant dense<0.000000e+00> : vector<16x128xf32>
    %363 = tpu.matmul %361, %362, %cst_153 {dimension_numbers = #tpu.dot_dimension_numbers<[1], [0], [0], [1], [0, 0, 1, 1], [], []>} : vector<16x256xbf16>, vector<256x128xbf16>, vector<16x128xf32> -> vector<16x128xf32>
    %c0_154 = arith.constant 0 : index
    %c0_155 = arith.constant 0 : index
    %364 = vector.load %arg8[%c0_154, %c0_155] : memref<1x128xf32, #tpu.memory_space<vmem>>, vector<1x128xf32>
    %365 = vector.broadcast %364 : vector<1x128xf32> to vector<16x128xf32>
    %366 = arith.addf %363, %365 : vector<16x128xf32>
    %c0_156 = arith.constant 0 : index
    %c0_157 = arith.constant 0 : index
    %367 = vector.load %arg9[%c0_156, %c0_157] : memref<16x128xf32, #tpu.memory_space<vmem>>, vector<16x128xf32>
    tpu.vector_store %arg9[%c0_156, %c0_157], %366 {strides = array<i32>} : memref<16x128xf32, #tpu.memory_space<vmem>>, vector<16x128xf32>,
    return
  }
  func.func @transform_0(%arg0: i32) -> (i32, i32, i32) {
    %c0_i32 = arith.constant 0 : i32
    %c0_i32_0 = arith.constant 0 : i32
    %c0_i32_1 = arith.constant 0 : i32
    return %c0_i32, %arg0, %c0_i32_0 : i32, i32, i32
  }
  func.func @transform_1(%arg0: i32) -> (i32, i32) {
    %c0_i32 = arith.constant 0 : i32
    %c0_i32_0 = arith.constant 0 : i32
    %c0_i32_1 = arith.constant 0 : i32
    return %c0_i32, %c0_i32_0 : i32, i32
  }
  func.func @transform_2(%arg0: i32) -> (i32, i32) {
    %c0_i32 = arith.constant 0 : i32
    %c0_i32_0 = arith.constant 0 : i32
    %c0_i32_1 = arith.constant 0 : i32
    return %c0_i32, %c0_i32_0 : i32, i32
  }
  func.func @transform_3(%arg0: i32) -> (i32, i32) {
    %c0_i32 = arith.constant 0 : i32
    %c0_i32_0 = arith.constant 0 : i32
    %c0_i32_1 = arith.constant 0 : i32
    return %c0_i32, %c0_i32_0 : i32, i32
  }
  func.func @transform_4(%arg0: i32) -> (i32, i32) {
    %c0_i32 = arith.constant 0 : i32
    %c0_i32_0 = arith.constant 0 : i32
    %c0_i32_1 = arith.constant 0 : i32
    return %c0_i32, %c0_i32_0 : i32, i32
  }
  func.func @transform_5(%arg0: i32) -> (i32, i32) {
    %c0_i32 = arith.constant 0 : i32
    %c0_i32_0 = arith.constant 0 : i32
    %c0_i32_1 = arith.constant 0 : i32
    return %c0_i32, %c0_i32_0 : i32, i32
  }
  func.func @transform_6(%arg0: i32) -> (i32, i32) {
    %c0_i32 = arith.constant 0 : i32
    %c0_i32_0 = arith.constant 0 : i32
    %c0_i32_1 = arith.constant 0 : i32
    return %c0_i32, %c0_i32_0 : i32, i32
  }
  func.func @transform_7(%arg0: i32) -> (i32, i32) {
    %c0_i32 = arith.constant 0 : i32
    %c0_i32_0 = arith.constant 0 : i32
    %c0_i32_1 = arith.constant 0 : i32
    return %c0_i32, %c0_i32_0 : i32, i32
  }
  func.func @transform_8(%arg0: i32) -> (i32, i32) {
    %c0_i32 = arith.constant 0 : i32
    %c0_i32_0 = arith.constant 0 : i32
    return %arg0, %c0_i32 : i32, i32
  }
}

</mosaic_0001>

<llo_original>
// kernel: rnnet_forward.1
$region0: #{rnnet_forward.1}
  #allocation0 [shape = 'u32[]', space=smem, size = 0x4, offset = 0x4, fixed_abs, tag = 'smem constant byte address 0x4 - core index']
  #allocation1 [shape = 'u32[72,128]{1,0:T(1,128)}', space=vmem, size = 0x9000, scoped, tag = 'internal scratch']
  #allocation2 [shape = 'f32[8,16,512]{2,1,0:T(8,128)}', space=vmem, size = 0x40000, scoped, tag = 'scratch operand']
  %s0 = inlined_call_operand.vmem [shape: bf16[8,16,128], index: 0, kind: input, shape index: {}]
  %s1 = inlined_call_operand.vmem [shape: bf16[128,512], index: 1, kind: input, shape index: {}]
  %s2 = inlined_call_operand.vmem [shape: bf16[128,512], index: 2, kind: input, shape index: {}]
  %s3 = inlined_call_operand.vmem [shape: f32[1,512], index: 3, kind: input, shape index: {}]
  %s4 = inlined_call_operand.vmem [shape: bf16[128,256], index: 4, kind: input, shape index: {}]
  %s5 = inlined_call_operand.vmem [shape: f32[1,256], index: 5, kind: input, shape index: {}]
  %s6 = inlined_call_operand.vmem [shape: bf16[256,128], index: 6, kind: input, shape index: {}]
  %s7 = inlined_call_operand.vmem [shape: f32[1,128], index: 7, kind: input, shape index: {}]
  %s8 = inlined_call_operand.vmem [shape: f32[16,128], index: 8, kind: output, shape index: {}]
  %s9 = sld [smem:[#allocation0]]
  $region42: #{rnnet_forward.1} parent=0
    _
  %s11 = ssub.s32 1, %s9
  %s12 = scalar_select 0, %s11, %s9
  // Predicated region
  $region2: #{rnnet_forward.1} parent=0 // pred_check
    _
  $region3: #{rnnet_forward.1} parent=0 // pred_check_branch
    %14 = sbr.rel (0) target = $region5
  $region4: #{rnnet_forward.1} parent=0 // pred_region
    _
  $region5: #{rnnet_forward.1} parent=0 // pred_fallthru
    _
  // Predicated region
  $region6: #{rnnet_forward.1} parent=0 // pred_check
    _
  $region7: #{rnnet_forward.1} parent=0 // pred_check_branch
    %16 = sbr.rel (0) target = $region9
  $region8: #{rnnet_forward.1} parent=0 // pred_region
    _
  $region9: #{rnnet_forward.1} parent=0 // pred_fallthru
    _
  // Predicated region
  $region10: #{rnnet_forward.1} parent=0 // pred_check
    _
  $region11: #{rnnet_forward.1} parent=0 // pred_check_branch
    %18 = sbr.rel (0) target = $region13
  $region12: #{rnnet_forward.1} parent=0 // pred_region
    _
  $region13: #{rnnet_forward.1} parent=0 // pred_fallthru
    _
  // Predicated region
  $region14: #{rnnet_forward.1} parent=0 // pred_check
    _
  $region15: #{rnnet_forward.1} parent=0 // pred_check_branch
    %20 = sbr.rel (0) target = $region17
  $region16: #{rnnet_forward.1} parent=0 // pred_region
    _
  $region17: #{rnnet_forward.1} parent=0 // pred_fallthru
    _
  // Predicated region
  $region18: #{rnnet_forward.1} parent=0 // pred_check
    _
  $region19: #{rnnet_forward.1} parent=0 // pred_check_branch
    %22 = sbr.rel (0) target = $region21
  $region20: #{rnnet_forward.1} parent=0 // pred_region
    _
  $region21: #{rnnet_forward.1} parent=0 // pred_fallthru
    _
  // Predicated region
  $region22: #{rnnet_forward.1} parent=0 // pred_check
    _
  $region23: #{rnnet_forward.1} parent=0 // pred_check_branch
    %24 = sbr.rel (0) target = $region25
  $region24: #{rnnet_forward.1} parent=0 // pred_region
    _
  $region25: #{rnnet_forward.1} parent=0 // pred_fallthru
    _
  // Predicated region
  $region26: #{rnnet_forward.1} parent=0 // pred_check
    _
  $region27: #{rnnet_forward.1} parent=0 // pred_check_branch
    %26 = sbr.rel (0) target = $region29
  $region28: #{rnnet_forward.1} parent=0 // pred_region
    _
  $region29: #{rnnet_forward.1} parent=0 // pred_fallthru
    _
  // Predicated region
  $region30: #{rnnet_forward.1} parent=0 // pred_check
    _
  $region31: #{rnnet_forward.1} parent=0 // pred_check_branch
    %28 = sbr.rel (0) target = $region33
  $region32: #{rnnet_forward.1} parent=0 // pred_region
    _
  $region33: #{rnnet_forward.1} parent=0 // pred_fallthru
    _
  %v30 = vld [vmem:[%s0] sm:$0xf]
  %v31 = vld [vmem:[%s0 + $0x4] sm:$0xf]
  %v32 = vld [vmem:[%s0 + $0x8] sm:$0xf]
  %v33 = vld [vmem:[%s0 + $0xc] sm:$0xf]
  %v34 = vld [vmem:[%s0 + $0x10] sm:$0xf]
  %v35 = vld [vmem:[%s0 + $0x14] sm:$0xf]
  %v36 = vld [vmem:[%s0 + $0x18] sm:$0xf]
  %v37 = vld [vmem:[%s0 + $0x1c] sm:$0xf]
  %v38 = vld [vmem:[%s0 + $0x20] sm:$0xf]
  %v39 = vld [vmem:[%s0 + $0x24] sm:$0xf]
  %v40 = vld [vmem:[%s0 + $0x28] sm:$0xf]
  %v41 = vld [vmem:[%s0 + $0x2c] sm:$0xf]
  %v42 = vld [vmem:[%s0 + $0x30] sm:$0xf]
  %v43 = vld [vmem:[%s0 + $0x34] sm:$0xf]
  %v44 = vld [vmem:[%s0 + $0x38] sm:$0xf]
  %v45 = vld [vmem:[%s0 + $0x3c] sm:$0xf]
  %v46 = vld [vmem:[%s1] sm:$0xff]
  %v47 = vld [vmem:[%s1 + $0x8] sm:$0xff]
  %v48 = vld [vmem:[%s1 + $0x10] sm:$0xff]
  %v49 = vld [vmem:[%s1 + $0x18] sm:$0xff]
  %v50 = vld [vmem:[%s1 + $0x20] sm:$0xff]
  %v51 = vld [vmem:[%s1 + $0x28] sm:$0xff]
  %v52 = vld [vmem:[%s1 + $0x30] sm:$0xff]
  %v53 = vld [vmem:[%s1 + $0x38] sm:$0xff]
  %v54 = vld [vmem:[%s1 + $0x40] sm:$0xff]
  %v55 = vld [vmem:[%s1 + $0x48] sm:$0xff]
  %v56 = vld [vmem:[%s1 + $0x50] sm:$0xff]
  %v57 = vld [vmem:[%s1 + $0x58] sm:$0xff]
  %v58 = vld [vmem:[%s1 + $0x60] sm:$0xff]
  %v59 = vld [vmem:[%s1 + $0x68] sm:$0xff]
  %v60 = vld [vmem:[%s1 + $0x70] sm:$0xff]
  %v61 = vld [vmem:[%s1 + $0x78] sm:$0xff]
  %v62 = vld [vmem:[%s1 + $0x80] sm:$0xff]
  %v63 = vld [vmem:[%s1 + $0x88] sm:$0xff]
  %v64 = vld [vmem:[%s1 + $0x90] sm:$0xff]
  %v65 = vld [vmem:[%s1 + $0x98] sm:$0xff]
  %v66 = vld [vmem:[%s1 + $0xa0] sm:$0xff]
  %v67 = vld [vmem:[%s1 + $0xa8] sm:$0xff]
  %v68 = vld [vmem:[%s1 + $0xb0] sm:$0xff]
  %v69 = vld [vmem:[%s1 + $0xb8] sm:$0xff]
  %v70 = vld [vmem:[%s1 + $0xc0] sm:$0xff]
  %v71 = vld [vmem:[%s1 + $0xc8] sm:$0xff]
  %v72 = vld [vmem:[%s1 + $0xd0] sm:$0xff]
  %v73 = vld [vmem:[%s1 + $0xd8] sm:$0xff]
  %v74 = vld [vmem:[%s1 + $0xe0] sm:$0xff]
  %v75 = vld [vmem:[%s1 + $0xe8] sm:$0xff]
  %v76 = vld [vmem:[%s1 + $0xf0] sm:$0xff]
  %v77 = vld [vmem:[%s1 + $0xf8] sm:$0xff]
  %v78 = vld [vmem:[%s3] sm:$0xf]
  %v80 = vperm.slane %v78, 0
  %v81 = vperm.slane %v78, 1
  %v82 = vperm.slane %v78, 2
  %v83 = vperm.slane %v78, 3
  %v104 = vunpack.c.l.b16 %v30
  %v105 = vunpack.c.l.b16 %v31
  %v106 = vunpack.c.l.b16 %v32
  %v107 = vunpack.c.l.b16 %v33
  %v108 = vunpack.c.l.b16 %v34
  %v109 = vunpack.c.l.b16 %v35
  %v110 = vunpack.c.l.b16 %v36
  %v111 = vunpack.c.l.b16 %v37
  %v112 = vunpack.c.l.b16 %v38
  %v113 = vunpack.c.l.b16 %v39
  %v114 = vunpack.c.l.b16 %v40
  %v115 = vunpack.c.l.b16 %v41
  %v116 = vunpack.c.l.b16 %v42
  %v117 = vunpack.c.l.b16 %v43
  %v118 = vunpack.c.l.b16 %v44
  %v119 = vunpack.c.l.b16 %v45
  %v120 = vpack.c.b16 %v105, %v104
  %v121 = vpack.c.b16 %v107, %v106
  %v122 = vpack.c.b16 %v109, %v108
  %v123 = vpack.c.b16 %v111, %v110
  %v124 = vpack.c.b16 %v113, %v112
  %v125 = vpack.c.b16 %v115, %v114
  %v126 = vpack.c.b16 %v117, %v116
  %v127 = vpack.c.b16 %v119, %v118
  %v168 = vunpack.c.l.b16 %v46
  %v169 = vunpack.c.h.b16 %v46
  %v170 = vunpack.c.l.b16 %v47
  %v171 = vunpack.c.h.b16 %v47
  %v172 = vunpack.c.l.b16 %v48
  %v173 = vunpack.c.h.b16 %v48
  %v174 = vunpack.c.l.b16 %v49
  %v175 = vunpack.c.h.b16 %v49
  %v176 = vunpack.c.l.b16 %v50
  %v177 = vunpack.c.h.b16 %v50
  %v178 = vunpack.c.l.b16 %v51
  %v179 = vunpack.c.h.b16 %v51
  %v180 = vunpack.c.l.b16 %v52
  %v181 = vunpack.c.h.b16 %v52
  %v182 = vunpack.c.l.b16 %v53
  %v183 = vunpack.c.h.b16 %v53
  %v184 = vunpack.c.l.b16 %v54
  %v185 = vunpack.c.h.b16 %v54
  %v186 = vunpack.c.l.b16 %v55
  %v187 = vunpack.c.h.b16 %v55
  %v188 = vunpack.c.l.b16 %v56
  %v189 = vunpack.c.h.b16 %v56
  %v190 = vunpack.c.l.b16 %v57
  %v191 = vunpack.c.h.b16 %v57
  %v192 = vunpack.c.l.b16 %v58
  %v193 = vunpack.c.h.b16 %v58
  %v194 = vunpack.c.l.b16 %v59
  %v195 = vunpack.c.h.b16 %v59
  %v196 = vunpack.c.l.b16 %v60
  %v197 = vunpack.c.h.b16 %v60
  %v198 = vunpack.c.l.b16 %v61
  %v199 = vunpack.c.h.b16 %v61
  %v200 = vunpack.c.l.b16 %v62
  %v201 = vunpack.c.h.b16 %v62
  %v202 = vunpack.c.l.b16 %v63
  %v203 = vunpack.c.h.b16 %v63
  %v204 = vunpack.c.l.b16 %v64
  %v205 = vunpack.c.h.b16 %v64
  %v206 = vunpack.c.l.b16 %v65
  %v207 = vunpack.c.h.b16 %v65
  %v208 = vunpack.c.l.b16 %v66
  %v209 = vunpack.c.h.b16 %v66
  %v210 = vunpack.c.l.b16 %v67
  %v211 = vunpack.c.h.b16 %v67
  %v212 = vunpack.c.l.b16 %v68
  %v213 = vunpack.c.h.b16 %v68
  %v214 = vunpack.c.l.b16 %v69
  %v215 = vunpack.c.h.b16 %v69
  %v216 = vunpack.c.l.b16 %v70
  %v217 = vunpack.c.h.b16 %v70
  %v218 = vunpack.c.l.b16 %v71
  %v219 = vunpack.c.h.b16 %v71
  %v220 = vunpack.c.l.b16 %v72
  %v221 = vunpack.c.h.b16 %v72
  %v222 = vunpack.c.l.b16 %v73
  %v223 = vunpack.c.h.b16 %v73
  %v224 = vunpack.c.l.b16 %v74
  %v225 = vunpack.c.h.b16 %v74
  %v226 = vunpack.c.l.b16 %v75
  %v227 = vunpack.c.h.b16 %v75
  %v228 = vunpack.c.l.b16 %v76
  %v229 = vunpack.c.h.b16 %v76
  %v230 = vunpack.c.l.b16 %v77
  %v231 = vunpack.c.h.b16 %v77
  %v232 = vpack.c.b16 %v172, %v168
  %v233 = vpack.c.b16 %v173, %v169
  %v234 = vpack.c.b16 %v174, %v170
  %v235 = vpack.c.b16 %v175, %v171
  %v236 = vpack.c.b16 %v180, %v176
  %v237 = vpack.c.b16 %v181, %v177
  %v238 = vpack.c.b16 %v182, %v178
  %v239 = vpack.c.b16 %v183, %v179
  %v240 = vpack.c.b16 %v188, %v184
  %v241 = vpack.c.b16 %v189, %v185
  %v242 = vpack.c.b16 %v190, %v186
  %v243 = vpack.c.b16 %v191, %v187
  %v244 = vpack.c.b16 %v196, %v192
  %v245 = vpack.c.b16 %v197, %v193
  %v246 = vpack.c.b16 %v198, %v194
  %v247 = vpack.c.b16 %v199, %v195
  %v248 = vpack.c.b16 %v204, %v200
  %v249 = vpack.c.b16 %v205, %v201
  %v250 = vpack.c.b16 %v206, %v202
  %v251 = vpack.c.b16 %v207, %v203
  %v252 = vpack.c.b16 %v212, %v208
  %v253 = vpack.c.b16 %v213, %v209
  %v254 = vpack.c.b16 %v214, %v210
  %v255 = vpack.c.b16 %v215, %v211
  %v256 = vpack.c.b16 %v220, %v216
  %v257 = vpack.c.b16 %v221, %v217
  %v258 = vpack.c.b16 %v222, %v218
  %v259 = vpack.c.b16 %v223, %v219
  %v260 = vpack.c.b16 %v228, %v224
  %v261 = vpack.c.b16 %v229, %v225
  %v262 = vpack.c.b16 %v230, %v226
  %v263 = vpack.c.b16 %v231, %v227
  %296 = vmatpush.bf16.msra.mxu0 %v260
  %297 = vmatpush.bf16.msra.mxu0 %v256
  %298 = vmatpush.bf16.msra.mxu0 %v252
  %299 = vmatpush.bf16.msra.mxu0 %v248
  %300 = vmatpush.bf16.msra.mxu0 %v244
  %301 = vmatpush.bf16.msra.mxu0 %v240
  %302 = vmatpush.bf16.msra.mxu0 %v236
  %303 = vmatpush.bf16.msra.mxu0 %v232
  %304 = vmatmul.bf16.gmra.mxu0 %v120
  %v305 = vpop.f32.mrf.mxu0
  %v306 = vadd.f32 %v80, %v305
  %v307 = vpop.f32.mrf.mxu0
  %v308 = vadd.f32 %v80, %v307
  %309 = vmatmul.bf16.gmra.mxu0 %v121
  %v310 = vpop.f32.mrf.mxu0
  %v311 = vadd.f32 %v80, %v310
  %v312 = vpop.f32.mrf.mxu0
  %v313 = vadd.f32 %v80, %v312
  %314 = vmatmul.bf16.gmra.mxu0 %v122
  %v315 = vpop.f32.mrf.mxu0
  %v316 = vadd.f32 %v80, %v315
  %v317 = vpop.f32.mrf.mxu0
  %v318 = vadd.f32 %v80, %v317
  %319 = vmatmul.bf16.gmra.mxu0 %v123
  %v320 = vpop.f32.mrf.mxu0
  %v321 = vadd.f32 %v80, %v320
  %v322 = vpop.f32.mrf.mxu0
  %v323 = vadd.f32 %v80, %v322
  %324 = vmatmul.bf16.gmra.mxu0 %v124
  %v325 = vpop.f32.mrf.mxu0
  %v326 = vadd.f32 %v80, %v325
  %v327 = vpop.f32.mrf.mxu0
  %v328 = vadd.f32 %v80, %v327
  %329 = vmatmul.bf16.gmra.mxu0 %v125
  %v330 = vpop.f32.mrf.mxu0
  %v331 = vadd.f32 %v80, %v330
  %v332 = vpop.f32.mrf.mxu0
  %v333 = vadd.f32 %v80, %v332
  %334 = vmatmul.bf16.gmra.mxu0 %v126
  %v335 = vpop.f32.mrf.mxu0
  %v336 = vadd.f32 %v80, %v335
  %v337 = vpop.f32.mrf.mxu0
  %v338 = vadd.f32 %v80, %v337
  %339 = vmatmul.bf16.gmra.mxu0 %v127
  %v340 = vpop.f32.mrf.mxu0
  %v341 = vadd.f32 %v80, %v340
  %v342 = vpop.f32.mrf.mxu0
  %v343 = vadd.f32 %v80, %v342
  %344 = vdwg.mxu0
  %345 = vmatpush.bf16.msra.mxu0 %v261
  %346 = vmatpush.bf16.msra.mxu0 %v257
  %347 = vmatpush.bf16.msra.mxu0 %v253
  %348 = vmatpush.bf16.msra.mxu0 %v249
  %349 = vmatpush.bf16.msra.mxu0 %v245
  %350 = vmatpush.bf16.msra.mxu0 %v241
  %351 = vmatpush.bf16.msra.mxu0 %v237
  %352 = vmatpush.bf16.msra.mxu0 %v233
  %353 = vmatmul.bf16.gmra.mxu0 %v120
  %v354 = vpop.f32.mrf.mxu0
  %v355 = vadd.f32 %v81, %v354
  %v356 = vpop.f32.mrf.mxu0
  %v357 = vadd.f32 %v81, %v356
  %358 = vmatmul.bf16.gmra.mxu0 %v121
  %v359 = vpop.f32.mrf.mxu0
  %v360 = vadd.f32 %v81, %v359
  %v361 = vpop.f32.mrf.mxu0
  %v362 = vadd.f32 %v81, %v361
  %363 = vmatmul.bf16.gmra.mxu0 %v122
  %v364 = vpop.f32.mrf.mxu0
  %v365 = vadd.f32 %v81, %v364
  %v366 = vpop.f32.mrf.mxu0
  %v367 = vadd.f32 %v81, %v366
  %368 = vmatmul.bf16.gmra.mxu0 %v123
  %v369 = vpop.f32.mrf.mxu0
  %v370 = vadd.f32 %v81, %v369
  %v371 = vpop.f32.mrf.mxu0
  %v372 = vadd.f32 %v81, %v371
  %373 = vmatmul.bf16.gmra.mxu0 %v124
  %v374 = vpop.f32.mrf.mxu0
  %v375 = vadd.f32 %v81, %v374
  %v376 = vpop.f32.mrf.mxu0
  %v377 = vadd.f32 %v81, %v376
  %378 = vmatmul.bf16.gmra.mxu0 %v125
  %v379 = vpop.f32.mrf.mxu0
  %v380 = vadd.f32 %v81, %v379
  %v381 = vpop.f32.mrf.mxu0
  %v382 = vadd.f32 %v81, %v381
  %383 = vmatmul.bf16.gmra.mxu0 %v126
  %v384 = vpop.f32.mrf.mxu0
  %v385 = vadd.f32 %v81, %v384
  %v386 = vpop.f32.mrf.mxu0
  %v387 = vadd.f32 %v81, %v386
  %388 = vmatmul.bf16.gmra.mxu0 %v127
  %v389 = vpop.f32.mrf.mxu0
  %v390 = vadd.f32 %v81, %v389
  %v391 = vpop.f32.mrf.mxu0
  %v392 = vadd.f32 %v81, %v391
  %393 = vdwg.mxu0
  %394 = vmatpush.bf16.msra.mxu0 %v262
  %395 = vmatpush.bf16.msra.mxu0 %v258
  %396 = vmatpush.bf16.msra.mxu0 %v254
  %397 = vmatpush.bf16.msra.mxu0 %v250
  %398 = vmatpush.bf16.msra.mxu0 %v246
  %399 = vmatpush.bf16.msra.mxu0 %v242
  %400 = vmatpush.bf16.msra.mxu0 %v238
  %401 = vmatpush.bf16.msra.mxu0 %v234
  %402 = vmatmul.bf16.gmra.mxu0 %v120
  %v403 = vpop.f32.mrf.mxu0
  %v404 = vadd.f32 %v82, %v403
  %v405 = vpop.f32.mrf.mxu0
  %v406 = vadd.f32 %v82, %v405
  %407 = vmatmul.bf16.gmra.mxu0 %v121
  %v408 = vpop.f32.mrf.mxu0
  %v409 = vadd.f32 %v82, %v408
  %v410 = vpop.f32.mrf.mxu0
  %v411 = vadd.f32 %v82, %v410
  %412 = vmatmul.bf16.gmra.mxu0 %v122
  %v413 = vpop.f32.mrf.mxu0
  %v414 = vadd.f32 %v82, %v413
  %v415 = vpop.f32.mrf.mxu0
  %v416 = vadd.f32 %v82, %v415
  %417 = vmatmul.bf16.gmra.mxu0 %v123
  %v418 = vpop.f32.mrf.mxu0
  %v419 = vadd.f32 %v82, %v418
  %v420 = vpop.f32.mrf.mxu0
  %v421 = vadd.f32 %v82, %v420
  %422 = vmatmul.bf16.gmra.mxu0 %v124
  %v423 = vpop.f32.mrf.mxu0
  %v424 = vadd.f32 %v82, %v423
  %v425 = vpop.f32.mrf.mxu0
  %v426 = vadd.f32 %v82, %v425
  %427 = vmatmul.bf16.gmra.mxu0 %v125
  %v428 = vpop.f32.mrf.mxu0
  %v429 = vadd.f32 %v82, %v428
  %v430 = vpop.f32.mrf.mxu0
  %v431 = vadd.f32 %v82, %v430
  %432 = vmatmul.bf16.gmra.mxu0 %v126
  %v433 = vpop.f32.mrf.mxu0
  %v434 = vadd.f32 %v82, %v433
  %v435 = vpop.f32.mrf.mxu0
  %v436 = vadd.f32 %v82, %v435
  %437 = vmatmul.bf16.gmra.mxu0 %v127
  %v438 = vpop.f32.mrf.mxu0
  %v439 = vadd.f32 %v82, %v438
  %v440 = vpop.f32.mrf.mxu0
  %v441 = vadd.f32 %v82, %v440
  %442 = vdwg.mxu0
  %443 = vmatpush.bf16.msra.mxu0 %v263
  %444 = vmatpush.bf16.msra.mxu0 %v259
  %445 = vmatpush.bf16.msra.mxu0 %v255
  %446 = vmatpush.bf16.msra.mxu0 %v251
  %447 = vmatpush.bf16.msra.mxu0 %v247
  %448 = vmatpush.bf16.msra.mxu0 %v243
  %449 = vmatpush.bf16.msra.mxu0 %v239
  %450 = vmatpush.bf16.msra.mxu0 %v235
  %451 = vmatmul.bf16.gmra.mxu0 %v120
  %v452 = vpop.f32.mrf.mxu0
  %v453 = vadd.f32 %v83, %v452
  %v454 = vpop.f32.mrf.mxu0
  %v455 = vadd.f32 %v83, %v454
  %456 = vmatmul.bf16.gmra.mxu0 %v121
  %v457 = vpop.f32.mrf.mxu0
  %v458 = vadd.f32 %v83, %v457
  %v459 = vpop.f32.mrf.mxu0
  %v460 = vadd.f32 %v83, %v459
  %461 = vmatmul.bf16.gmra.mxu0 %v122
  %v462 = vpop.f32.mrf.mxu0
  %v463 = vadd.f32 %v83, %v462
  %v464 = vpop.f32.mrf.mxu0
  %v465 = vadd.f32 %v83, %v464
  %466 = vmatmul.bf16.gmra.mxu0 %v123
  %v467 = vpop.f32.mrf.mxu0
  %v468 = vadd.f32 %v83, %v467
  %v469 = vpop.f32.mrf.mxu0
  %v470 = vadd.f32 %v83, %v469
  %471 = vmatmul.bf16.gmra.mxu0 %v124
  %v472 = vpop.f32.mrf.mxu0
  %v473 = vadd.f32 %v83, %v472
  %v474 = vpop.f32.mrf.mxu0
  %v475 = vadd.f32 %v83, %v474
  %476 = vmatmul.bf16.gmra.mxu0 %v125
  %v477 = vpop.f32.mrf.mxu0
  %v478 = vadd.f32 %v83, %v477
  %v479 = vpop.f32.mrf.mxu0
  %v480 = vadd.f32 %v83, %v479
  %481 = vmatmul.bf16.gmra.mxu0 %v126
  %v482 = vpop.f32.mrf.mxu0
  %v483 = vadd.f32 %v83, %v482
  %v484 = vpop.f32.mrf.mxu0
  %v485 = vadd.f32 %v83, %v484
  %486 = vmatmul.bf16.gmra.mxu0 %v127
  %v487 = vpop.f32.mrf.mxu0
  %v488 = vadd.f32 %v83, %v487
  %v489 = vpop.f32.mrf.mxu0
  %v490 = vadd.f32 %v83, %v489
  %491 = vdwg.mxu0
  %492 = vst [vmem:[#allocation2] sm:$0xff] %v306
  %493 = vst [vmem:[#allocation2 + $0x8] sm:$0xff] %v355
  %494 = vst [vmem:[#allocation2 + $0x10] sm:$0xff] %v404
  %495 = vst [vmem:[#allocation2 + $0x18] sm:$0xff] %v453
  %496 = vst [vmem:[#allocation2 + $0x20] sm:$0xff] %v308
  %497 = vst [vmem:[#allocation2 + $0x28] sm:$0xff] %v357
  %498 = vst [vmem:[#allocation2 + $0x30] sm:$0xff] %v406
  %499 = vst [vmem:[#allocation2 + $0x38] sm:$0xff] %v455
  %500 = vst [vmem:[#allocation2 + $0x40] sm:$0xff] %v311
  %501 = vst [vmem:[#allocation2 + $0x48] sm:$0xff] %v360
  %502 = vst [vmem:[#allocation2 + $0x50] sm:$0xff] %v409
  %503 = vst [vmem:[#allocation2 + $0x58] sm:$0xff] %v458
  %504 = vst [vmem:[#allocation2 + $0x60] sm:$0xff] %v313
  %505 = vst [vmem:[#allocation2 + $0x68] sm:$0xff] %v362
  %506 = vst [vmem:[#allocation2 + $0x70] sm:$0xff] %v411
  %507 = vst [vmem:[#allocation2 + $0x78] sm:$0xff] %v460
  %508 = vst [vmem:[#allocation2 + $0x80] sm:$0xff] %v316
  %509 = vst [vmem:[#allocation2 + $0x88] sm:$0xff] %v365
  %510 = vst [vmem:[#allocation2 + $0x90] sm:$0xff] %v414
  %511 = vst [vmem:[#allocation2 + $0x98] sm:$0xff] %v463
  %512 = vst [vmem:[#allocation2 + $0xa0] sm:$0xff] %v318
  %513 = vst [vmem:[#allocation2 + $0xa8] sm:$0xff] %v367
  %514 = vst [vmem:[#allocation2 + $0xb0] sm:$0xff] %v416
  %515 = vst [vmem:[#allocation2 + $0xb8] sm:$0xff] %v465
  %516 = vst [vmem:[#allocation2 + $0xc0] sm:$0xff] %v321
  %517 = vst [vmem:[#allocation2 + $0xc8] sm:$0xff] %v370
  %518 = vst [vmem:[#allocation2 + $0xd0] sm:$0xff] %v419
  %519 = vst [vmem:[#allocation2 + $0xd8] sm:$0xff] %v468
  %520 = vst [vmem:[#allocation2 + $0xe0] sm:$0xff] %v323
  %521 = vst [vmem:[#allocation2 + $0xe8] sm:$0xff] %v372
  %522 = vst [vmem:[#allocation2 + $0xf0] sm:$0xff] %v421
  %523 = vst [vmem:[#allocation2 + $0xf8] sm:$0xff] %v470
  %524 = vst [vmem:[#allocation2 + $0x100] sm:$0xff] %v326
  %525 = vst [vmem:[#allocation2 + $0x108] sm:$0xff] %v375
  %526 = vst [vmem:[#allocation2 + $0x110] sm:$0xff] %v424
  %527 = vst [vmem:[#allocation2 + $0x118] sm:$0xff] %v473
  %528 = vst [vmem:[#allocation2 + $0x120] sm:$0xff] %v328
  %529 = vst [vmem:[#allocation2 + $0x128] sm:$0xff] %v377
  %530 = vst [vmem:[#allocation2 + $0x130] sm:$0xff] %v426
  %531 = vst [vmem:[#allocation2 + $0x138] sm:$0xff] %v475
  %532 = vst [vmem:[#allocation2 + $0x140] sm:$0xff] %v331
  %533 = vst [vmem:[#allocation2 + $0x148] sm:$0xff] %v380
  %534 = vst [vmem:[#allocation2 + $0x150] sm:$0xff] %v429
  %535 = vst [vmem:[#allocation2 + $0x158] sm:$0xff] %v478
  %536 = vst [vmem:[#allocation2 + $0x160] sm:$0xff] %v333
  %537 = vst [vmem:[#allocation2 + $0x168] sm:$0xff] %v382
  %538 = vst [vmem:[#allocation2 + $0x170] sm:$0xff] %v431
  %539 = vst [vmem:[#allocation2 + $0x178] sm:$0xff] %v480
  %540 = vst [vmem:[#allocation2 + $0x180] sm:$0xff] %v336
  %541 = vst [vmem:[#allocation2 + $0x188] sm:$0xff] %v385
  %542 = vst [vmem:[#allocation2 + $0x190] sm:$0xff] %v434
  %543 = vst [vmem:[#allocation2 + $0x198] sm:$0xff] %v483
  %544 = vst [vmem:[#allocation2 + $0x1a0] sm:$0xff] %v338
  %545 = vst [vmem:[#allocation2 + $0x1a8] sm:$0xff] %v387
  %546 = vst [vmem:[#allocation2 + $0x1b0] sm:$0xff] %v436
  %547 = vst [vmem:[#allocation2 + $0x1b8] sm:$0xff] %v485
  %548 = vst [vmem:[#allocation2 + $0x1c0] sm:$0xff] %v341
  %549 = vst [vmem:[#allocation2 + $0x1c8] sm:$0xff] %v390
  %550 = vst [vmem:[#allocation2 + $0x1d0] sm:$0xff] %v439
  %551 = vst [vmem:[#allocation2 + $0x1d8] sm:$0xff] %v488
  %552 = vst [vmem:[#allocation2 + $0x1e0] sm:$0xff] %v343
  %553 = vst [vmem:[#allocation2 + $0x1e8] sm:$0xff] %v392
  %554 = vst [vmem:[#allocation2 + $0x1f0] sm:$0xff] %v441
  %555 = vst [vmem:[#allocation2 + $0x1f8] sm:$0xff] %v490
  %v556 = vld [vmem:[#allocation2] sm:$0xff]
  %v557 = vld [vmem:[#allocation2 + $0x8] sm:$0xff]
  %v558 = vld [vmem:[#allocation2 + $0x10] sm:$0xff]
  %v559 = vld [vmem:[#allocation2 + $0x18] sm:$0xff]
  %v560 = vld [vmem:[#allocation2 + $0x20] sm:$0xff]
  %v561 = vld [vmem:[#allocation2 + $0x28] sm:$0xff]
  %v562 = vld [vmem:[#allocation2 + $0x30] sm:$0xff]
  %v563 = vld [vmem:[#allocation2 + $0x38] sm:$0xff]
  %v564 = vld [vmem:[%s2] sm:$0xff]
  %v565 = vld [vmem:[%s2 + $0x10] sm:$0xff]
  %v566 = vld [vmem:[%s2 + $0x20] sm:$0xff]
  %v567 = vld [vmem:[%s2 + $0x30] sm:$0xff]
  %v568 = vld [vmem:[%s2 + $0x40] sm:$0xff]
  %v569 = vld [vmem:[%s2 + $0x50] sm:$0xff]
  %v570 = vld [vmem:[%s2 + $0x60] sm:$0xff]
  %v571 = vld [vmem:[%s2 + $0x70] sm:$0xff]
  %v572 = vld [vmem:[%s2 + $0x80] sm:$0xff]
  %v573 = vld [vmem:[%s2 + $0x90] sm:$0xff]
  %v574 = vld [vmem:[%s2 + $0xa0] sm:$0xff]
  %v575 = vld [vmem:[%s2 + $0xb0] sm:$0xff]
  %v576 = vld [vmem:[%s2 + $0xc0] sm:$0xff]
  %v577 = vld [vmem:[%s2 + $0xd0] sm:$0xff]
  %v578 = vld [vmem:[%s2 + $0xe0] sm:$0xff]
  %v579 = vld [vmem:[%s2 + $0xf0] sm:$0xff]
  %v596 = vunpack.c.l.b16 %v564
  %v597 = vunpack.c.h.b16 %v564
  %v598 = vunpack.c.l.b16 %v565
  %v599 = vunpack.c.h.b16 %v565
  %v600 = vunpack.c.l.b16 %v566
  %v601 = vunpack.c.h.b16 %v566
  %v602 = vunpack.c.l.b16 %v567
  %v603 = vunpack.c.h.b16 %v567
  %v604 = vunpack.c.l.b16 %v568
  %v605 = vunpack.c.h.b16 %v568
  %v606 = vunpack.c.l.b16 %v569
  %v607 = vunpack.c.h.b16 %v569
  %v608 = vunpack.c.l.b16 %v570
  %v609 = vunpack.c.h.b16 %v570
  %v610 = vunpack.c.l.b16 %v571
  %v611 = vunpack.c.h.b16 %v571
  %v612 = vunpack.c.l.b16 %v572
  %v613 = vunpack.c.h.b16 %v572
  %v614 = vunpack.c.l.b16 %v573
  %v615 = vunpack.c.h.b16 %v573
  %v616 = vunpack.c.l.b16 %v574
  %v617 = vunpack.c.h.b16 %v574
  %v618 = vunpack.c.l.b16 %v575
  %v619 = vunpack.c.h.b16 %v575
  %v620 = vunpack.c.l.b16 %v576
  %v621 = vunpack.c.h.b16 %v576
  %v622 = vunpack.c.l.b16 %v577
  %v623 = vunpack.c.h.b16 %v577
  %v624 = vunpack.c.l.b16 %v578
  %v625 = vunpack.c.h.b16 %v578
  %v626 = vunpack.c.l.b16 %v579
  %v627 = vunpack.c.h.b16 %v579
  %v628 = vpack.c.b16 %v598, %v596
  %v629 = vpack.c.b16 %v599, %v597
  %v630 = vpack.c.b16 %v602, %v600
  %v631 = vpack.c.b16 %v603, %v601
  %v632 = vpack.c.b16 %v606, %v604
  %v633 = vpack.c.b16 %v607, %v605
  %v634 = vpack.c.b16 %v610, %v608
  %v635 = vpack.c.b16 %v611, %v609
  %v636 = vpack.c.b16 %v614, %v612
  %v637 = vpack.c.b16 %v615, %v613
  %v638 = vpack.c.b16 %v618, %v616
  %v639 = vpack.c.b16 %v619, %v617
  %v640 = vpack.c.b16 %v622, %v620
  %v641 = vpack.c.b16 %v623, %v621
  %v642 = vpack.c.b16 %v626, %v624
  %v643 = vpack.c.b16 %v627, %v625
  %660 = vmatpush.bf16.msra.mxu0 %v642
  %661 = vmatpush.bf16.msra.mxu0 %v640
  %662 = vmatpush.bf16.msra.mxu0 %v638
  %663 = vmatpush.bf16.msra.mxu0 %v636
  %664 = vmatpush.bf16.msra.mxu0 %v634
  %665 = vmatpush.bf16.msra.mxu0 %v632
  %666 = vmatpush.bf16.msra.mxu0 %v630
  %667 = vmatpush.bf16.msra.mxu0 %v628
  %668 = vmatmul.bf16.gmra.mxu0 0
  %v669 = vpop.f32.mrf.mxu0
  %v670 = vadd.f32 %v556, %v669
  %v671 = vpop.f32.mrf.mxu0
  %v672 = vadd.f32 %v560, %v671
  %673 = vdwg.mxu0
  %674 = vmatpush.bf16.msra.mxu0 %v643
  %675 = vmatpush.bf16.msra.mxu0 %v641
  %676 = vmatpush.bf16.msra.mxu0 %v639
  %677 = vmatpush.bf16.msra.mxu0 %v637
  %678 = vmatpush.bf16.msra.mxu0 %v635
  %679 = vmatpush.bf16.msra.mxu0 %v633
  %680 = vmatpush.bf16.msra.mxu0 %v631
  %681 = vmatpush.bf16.msra.mxu0 %v629
  %682 = vmatmul.bf16.gmra.mxu0 0
  %v683 = vpop.f32.mrf.mxu0
  %v684 = vadd.f32 %v557, %v683
  %v685 = vpop.f32.mrf.mxu0
  %v686 = vadd.f32 %v561, %v685
  %687 = vdwg.mxu0
  %v688 = vmul.f32 %v670, 0.5
  %v689 = vmul.f32 %v672, 0.5
  %v690 = vtanh.pop %v688
  %v691 = vtanh.pop %v689
  %v692 = vmul.f32 %v690, 0.5
  %v693 = vmul.f32 %v691, 0.5
  %v694 = vadd.f32 %v692, 0.5
  %v695 = vadd.f32 %v693, 0.5
  %v696 = vmul.f32 %v684, 0.5
  %v697 = vmul.f32 %v686, 0.5
  %v698 = vtanh.pop %v696
  %v699 = vtanh.pop %v697
  %v700 = vmul.f32 %v698, 0.5
  %v701 = vmul.f32 %v699, 0.5
  %v702 = vadd.f32 %v700, 0.5
  %v703 = vadd.f32 %v701, 0.5
  %v704 = vld [vmem:[%s2 + $0x8] sm:$0xff]
  %v705 = vld [vmem:[%s2 + $0x18] sm:$0xff]
  %v706 = vld [vmem:[%s2 + $0x28] sm:$0xff]
  %v707 = vld [vmem:[%s2 + $0x38] sm:$0xff]
  %v708 = vld [vmem:[%s2 + $0x48] sm:$0xff]
  %v709 = vld [vmem:[%s2 + $0x58] sm:$0xff]
  %v710 = vld [vmem:[%s2 + $0x68] sm:$0xff]
  %v711 = vld [vmem:[%s2 + $0x78] sm:$0xff]
  %v712 = vld [vmem:[%s2 + $0x88] sm:$0xff]
  %v713 = vld [vmem:[%s2 + $0x98] sm:$0xff]
  %v714 = vld [vmem:[%s2 + $0xa8] sm:$0xff]
  %v715 = vld [vmem:[%s2 + $0xb8] sm:$0xff]
  %v716 = vld [vmem:[%s2 + $0xc8] sm:$0xff]
  %v717 = vld [vmem:[%s2 + $0xd8] sm:$0xff]
  %v718 = vld [vmem:[%s2 + $0xe8] sm:$0xff]
  %v719 = vld [vmem:[%s2 + $0xf8] sm:$0xff]
  %v736 = vunpack.c.l.b16 %v704
  %v737 = vunpack.c.h.b16 %v704
  %v738 = vunpack.c.l.b16 %v705
  %v739 = vunpack.c.h.b16 %v705
  %v740 = vunpack.c.l.b16 %v706
  %v741 = vunpack.c.h.b16 %v706
  %v742 = vunpack.c.l.b16 %v707
  %v743 = vunpack.c.h.b16 %v707
  %v744 = vunpack.c.l.b16 %v708
  %v745 = vunpack.c.h.b16 %v708
  %v746 = vunpack.c.l.b16 %v709
  %v747 = vunpack.c.h.b16 %v709
  %v748 = vunpack.c.l.b16 %v710
  %v749 = vunpack.c.h.b16 %v710
  %v750 = vunpack.c.l.b16 %v711
  %v751 = vunpack.c.h.b16 %v711
  %v752 = vunpack.c.l.b16 %v712
  %v753 = vunpack.c.h.b16 %v712
  %v754 = vunpack.c.l.b16 %v713
  %v755 = vunpack.c.h.b16 %v713
  %v756 = vunpack.c.l.b16 %v714
  %v757 = vunpack.c.h.b16 %v714
  %v758 = vunpack.c.l.b16 %v715
  %v759 = vunpack.c.h.b16 %v715
  %v760 = vunpack.c.l.b16 %v716
  %v761 = vunpack.c.h.b16 %v716
  %v762 = vunpack.c.l.b16 %v717
  %v763 = vunpack.c.h.b16 %v717
  %v764 = vunpack.c.l.b16 %v718
  %v765 = vunpack.c.h.b16 %v718
  %v766 = vunpack.c.l.b16 %v719
  %v767 = vunpack.c.h.b16 %v719
  %v768 = vpack.c.b16 %v738, %v736
  %v769 = vpack.c.b16 %v739, %v737
  %v770 = vpack.c.b16 %v742, %v740
  %v771 = vpack.c.b16 %v743, %v741
  %v772 = vpack.c.b16 %v746, %v744
  %v773 = vpack.c.b16 %v747, %v745
  %v774 = vpack.c.b16 %v750, %v748
  %v775 = vpack.c.b16 %v751, %v749
  %v776 = vpack.c.b16 %v754, %v752
  %v777 = vpack.c.b16 %v755, %v753
  %v778 = vpack.c.b16 %v758, %v756
  %v779 = vpack.c.b16 %v759, %v757
  %v780 = vpack.c.b16 %v762, %v760
  %v781 = vpack.c.b16 %v763, %v761
  %v782 = vpack.c.b16 %v766, %v764
  %v783 = vpack.c.b16 %v767, %v765
  %800 = vmatpush.bf16.msra.mxu0 %v782
  %801 = vmatpush.bf16.msra.mxu0 %v780
  %802 = vmatpush.bf16.msra.mxu0 %v778
  %803 = vmatpush.bf16.msra.mxu0 %v776
  %804 = vmatpush.bf16.msra.mxu0 %v774
  %805 = vmatpush.bf16.msra.mxu0 %v772
  %806 = vmatpush.bf16.msra.mxu0 %v770
  %807 = vmatpush.bf16.msra.mxu0 %v768
  %808 = vmatmul.bf16.gmra.mxu0 0
  %v809 = vpop.f32.mrf.mxu0
  %v810 = vadd.f32 %v558, %v809
  %v811 = vpop.f32.mrf.mxu0
  %v812 = vadd.f32 %v562, %v811
  %813 = vdwg.mxu0
  %814 = vmatpush.bf16.msra.mxu0 %v783
  %815 = vmatpush.bf16.msra.mxu0 %v781
  %816 = vmatpush.bf16.msra.mxu0 %v779
  %817 = vmatpush.bf16.msra.mxu0 %v777
  %818 = vmatpush.bf16.msra.mxu0 %v775
  %819 = vmatpush.bf16.msra.mxu0 %v773
  %820 = vmatpush.bf16.msra.mxu0 %v771
  %821 = vmatpush.bf16.msra.mxu0 %v769
  %822 = vmatmul.bf16.gmra.mxu0 0
  %v823 = vpop.f32.mrf.mxu0
  %v824 = vadd.f32 %v559, %v823
  %v825 = vpop.f32.mrf.mxu0
  %v826 = vadd.f32 %v563, %v825
  %827 = vdwg.mxu0
  %v828 = vtanh.pop %v810
  %v829 = vtanh.pop %v812
  %v830 = vmul.f32 %v824, 0.5
  %v831 = vmul.f32 %v826, 0.5
  %v832 = vtanh.pop %v830
  %v833 = vtanh.pop %v831
  %v834 = vmul.f32 %v832, 0.5
  %v835 = vmul.f32 %v833, 0.5
  %v836 = vadd.f32 %v834, 0.5
  %v837 = vadd.f32 %v835, 0.5
  %v838 = vmul.f32 %v702, 0.0
  %v839 = vmul.f32 %v703, 0.0
  %v840 = vmul.f32 %v694, %v828
  %v841 = vmul.f32 %v695, %v829
  %v842 = vadd.f32 %v838, %v840
  %v843 = vadd.f32 %v839, %v841
  %v844 = vtanh.pop %v842
  %v845 = vtanh.pop %v843
  %v846 = vmul.f32 %v836, %v844
  %v847 = vmul.f32 %v837, %v845
  %v848 = vpack.c.bf16 %v847, %v846
  %s849 = scalar_lea.vmem [#allocation2], 64
  %v850 = vld [vmem:[%s849] sm:$0xff]
  %v851 = vld [vmem:[%s849 + $0x8] sm:$0xff]
  %v852 = vld [vmem:[%s849 + $0x10] sm:$0xff]
  %v853 = vld [vmem:[%s849 + $0x18] sm:$0xff]
  %v854 = vld [vmem:[%s849 + $0x20] sm:$0xff]
  %v855 = vld [vmem:[%s849 + $0x28] sm:$0xff]
  %v856 = vld [vmem:[%s849 + $0x30] sm:$0xff]
  %v857 = vld [vmem:[%s849 + $0x38] sm:$0xff]
  %858 = vmatpush.bf16.msra.mxu0 %v642
  %859 = vmatpush.bf16.msra.mxu0 %v640
  %860 = vmatpush.bf16.msra.mxu0 %v638
  %861 = vmatpush.bf16.msra.mxu0 %v636
  %862 = vmatpush.bf16.msra.mxu0 %v634
  %863 = vmatpush.bf16.msra.mxu0 %v632
  %864 = vmatpush.bf16.msra.mxu0 %v630
  %865 = vmatpush.bf16.msra.mxu0 %v628
  %866 = vmatmul.bf16.gmra.mxu0 %v848
  %v867 = vpop.f32.mrf.mxu0
  %v868 = vadd.f32 %v850, %v867
  %v869 = vpop.f32.mrf.mxu0
  %v870 = vadd.f32 %v854, %v869
  %871 = vdwg.mxu0
  %872 = vmatpush.bf16.msra.mxu0 %v643
  %873 = vmatpush.bf16.msra.mxu0 %v641
  %874 = vmatpush.bf16.msra.mxu0 %v639
  %875 = vmatpush.bf16.msra.mxu0 %v637
  %876 = vmatpush.bf16.msra.mxu0 %v635
  %877 = vmatpush.bf16.msra.mxu0 %v633
  %878 = vmatpush.bf16.msra.mxu0 %v631
  %879 = vmatpush.bf16.msra.mxu0 %v629
  %880 = vmatmul.bf16.gmra.mxu0 %v848
  %v881 = vpop.f32.mrf.mxu0
  %v882 = vadd.f32 %v851, %v881
  %v883 = vpop.f32.mrf.mxu0
  %v884 = vadd.f32 %v855, %v883
  %885 = vdwg.mxu0
  %v886 = vmul.f32 %v868, 0.5
  %v887 = vmul.f32 %v870, 0.5
  %v888 = vtanh.pop %v886
  %v889 = vtanh.pop %v887
  %v890 = vmul.f32 %v888, 0.5
  %v891 = vmul.f32 %v889, 0.5
  %v892 = vadd.f32 %v890, 0.5
  %v893 = vadd.f32 %v891, 0.5
  %v894 = vmul.f32 %v882, 0.5
  %v895 = vmul.f32 %v884, 0.5
  %v896 = vtanh.pop %v894
  %v897 = vtanh.pop %v895
  %v898 = vmul.f32 %v896, 0.5
  %v899 = vmul.f32 %v897, 0.5
  %v900 = vadd.f32 %v898, 0.5
  %v901 = vadd.f32 %v899, 0.5
  %902 = vmatpush.bf16.msra.mxu0 %v782
  %903 = vmatpush.bf16.msra.mxu0 %v780
  %904 = vmatpush.bf16.msra.mxu0 %v778
  %905 = vmatpush.bf16.msra.mxu0 %v776
  %906 = vmatpush.bf16.msra.mxu0 %v774
  %907 = vmatpush.bf16.msra.mxu0 %v772
  %908 = vmatpush.bf16.msra.mxu0 %v770
  %909 = vmatpush.bf16.msra.mxu0 %v768
  %910 = vmatmul.bf16.gmra.mxu0 %v848
  %v911 = vpop.f32.mrf.mxu0
  %v912 = vadd.f32 %v852, %v911
  %v913 = vpop.f32.mrf.mxu0
  %v914 = vadd.f32 %v856, %v913
  %915 = vdwg.mxu0
  %916 = vmatpush.bf16.msra.mxu0 %v783
  %917 = vmatpush.bf16.msra.mxu0 %v781
  %918 = vmatpush.bf16.msra.mxu0 %v779
  %919 = vmatpush.bf16.msra.mxu0 %v777
  %920 = vmatpush.bf16.msra.mxu0 %v775
  %921 = vmatpush.bf16.msra.mxu0 %v773
  %922 = vmatpush.bf16.msra.mxu0 %v771
  %923 = vmatpush.bf16.msra.mxu0 %v769
  %924 = vmatmul.bf16.gmra.mxu0 %v848
  %v925 = vpop.f32.mrf.mxu0
  %v926 = vadd.f32 %v853, %v925
  %v927 = vpop.f32.mrf.mxu0
  %v928 = vadd.f32 %v857, %v927
  %929 = vdwg.mxu0
  %v930 = vtanh.pop %v912
  %v931 = vtanh.pop %v914
  %v932 = vmul.f32 %v926, 0.5
  %v933 = vmul.f32 %v928, 0.5
  %v934 = vtanh.pop %v932
  %v935 = vtanh.pop %v933
  %v936 = vmul.f32 %v934, 0.5
  %v937 = vmul.f32 %v935, 0.5
  %v938 = vadd.f32 %v936, 0.5
  %v939 = vadd.f32 %v937, 0.5
  %v940 = vmul.f32 %v900, %v842
  %v941 = vmul.f32 %v901, %v843
  %v942 = vmul.f32 %v892, %v930
  %v943 = vmul.f32 %v893, %v931
  %v944 = vadd.f32 %v940, %v942
  %v945 = vadd.f32 %v941, %v943
  %v946 = vtanh.pop %v944
  %v947 = vtanh.pop %v945
  %v948 = vmul.f32 %v938, %v946
  %v949 = vmul.f32 %v939, %v947
  %v950 = vpack.c.bf16 %v949, %v948
  %s951 = scalar_lea.vmem [#allocation2], 128
  %v952 = vld [vmem:[%s951] sm:$0xff]
  %v953 = vld [vmem:[%s951 + $0x8] sm:$0xff]
  %v954 = vld [vmem:[%s951 + $0x10] sm:$0xff]
  %v955 = vld [vmem:[%s951 + $0x18] sm:$0xff]
  %v956 = vld [vmem:[%s951 + $0x20] sm:$0xff]
  %v957 = vld [vmem:[%s951 + $0x28] sm:$0xff]
  %v958 = vld [vmem:[%s951 + $0x30] sm:$0xff]
  %v959 = vld [vmem:[%s951 + $0x38] sm:$0xff]
  %960 = vmatpush.bf16.msra.mxu0 %v642
  %961 = vmatpush.bf16.msra.mxu0 %v640
  %962 = vmatpush.bf16.msra.mxu0 %v638
  %963 = vmatpush.bf16.msra.mxu0 %v636
  %964 = vmatpush.bf16.msra.mxu0 %v634
  %965 = vmatpush.bf16.msra.mxu0 %v632
  %966 = vmatpush.bf16.msra.mxu0 %v630
  %967 = vmatpush.bf16.msra.mxu0 %v628
  %968 = vmatmul.bf16.gmra.mxu0 %v950
  %v969 = vpop.f32.mrf.mxu0
  %v970 = vadd.f32 %v952, %v969
  %v971 = vpop.f32.mrf.mxu0
  %v972 = vadd.f32 %v956, %v971
  %973 = vdwg.mxu0
  %974 = vmatpush.bf16.msra.mxu0 %v643
  %975 = vmatpush.bf16.msra.mxu0 %v641
  %976 = vmatpush.bf16.msra.mxu0 %v639
  %977 = vmatpush.bf16.msra.mxu0 %v637
  %978 = vmatpush.bf16.msra.mxu0 %v635
  %979 = vmatpush.bf16.msra.mxu0 %v633
  %980 = vmatpush.bf16.msra.mxu0 %v631
  %981 = vmatpush.bf16.msra.mxu0 %v629
  %982 = vmatmul.bf16.gmra.mxu0 %v950
  %v983 = vpop.f32.mrf.mxu0
  %v984 = vadd.f32 %v953, %v983
  %v985 = vpop.f32.mrf.mxu0
  %v986 = vadd.f32 %v957, %v985
  %987 = vdwg.mxu0
  %v988 = vmul.f32 %v970, 0.5
  %v989 = vmul.f32 %v972, 0.5
  %v990 = vtanh.pop %v988
  %v991 = vtanh.pop %v989
  %v992 = vmul.f32 %v990, 0.5
  %v993 = vmul.f32 %v991, 0.5
  %v994 = vadd.f32 %v992, 0.5
  %v995 = vadd.f32 %v993, 0.5
  %v996 = vmul.f32 %v984, 0.5
  %v997 = vmul.f32 %v986, 0.5
  %v998 = vtanh.pop %v996
  %v999 = vtanh.pop %v997
  %v1000 = vmul.f32 %v998, 0.5
  %v1001 = vmul.f32 %v999, 0.5
  %v1002 = vadd.f32 %v1000, 0.5
  %v1003 = vadd.f32 %v1001, 0.5
  %1004 = vmatpush.bf16.msra.mxu0 %v782
  %1005 = vmatpush.bf16.msra.mxu0 %v780
  %1006 = vmatpush.bf16.msra.mxu0 %v778
  %1007 = vmatpush.bf16.msra.mxu0 %v776
  %1008 = vmatpush.bf16.msra.mxu0 %v774
  %1009 = vmatpush.bf16.msra.mxu0 %v772
  %1010 = vmatpush.bf16.msra.mxu0 %v770
  %1011 = vmatpush.bf16.msra.mxu0 %v768
  %1012 = vmatmul.bf16.gmra.mxu0 %v950
  %v1013 = vpop.f32.mrf.mxu0
  %v1014 = vadd.f32 %v954, %v1013
  %v1015 = vpop.f32.mrf.mxu0
  %v1016 = vadd.f32 %v958, %v1015
  %1017 = vdwg.mxu0
  %1018 = vmatpush.bf16.msra.mxu0 %v783
  %1019 = vmatpush.bf16.msra.mxu0 %v781
  %1020 = vmatpush.bf16.msra.mxu0 %v779
  %1021 = vmatpush.bf16.msra.mxu0 %v777
  %1022 = vmatpush.bf16.msra.mxu0 %v775
  %1023 = vmatpush.bf16.msra.mxu0 %v773
  %1024 = vmatpush.bf16.msra.mxu0 %v771
  %1025 = vmatpush.bf16.msra.mxu0 %v769
  %1026 = vmatmul.bf16.gmra.mxu0 %v950
  %v1027 = vpop.f32.mrf.mxu0
  %v1028 = vadd.f32 %v955, %v1027
  %v1029 = vpop.f32.mrf.mxu0
  %v1030 = vadd.f32 %v959, %v1029
  %1031 = vdwg.mxu0
  %v1032 = vtanh.pop %v1014
  %v1033 = vtanh.pop %v1016
  %v1034 = vmul.f32 %v1028, 0.5
  %v1035 = vmul.f32 %v1030, 0.5
  %v1036 = vtanh.pop %v1034
  %v1037 = vtanh.pop %v1035
  %v1038 = vmul.f32 %v1036, 0.5
  %v1039 = vmul.f32 %v1037, 0.5
  %v1040 = vadd.f32 %v1038, 0.5
  %v1041 = vadd.f32 %v1039, 0.5
  %v1042 = vmul.f32 %v1002, %v944
  %v1043 = vmul.f32 %v1003, %v945
  %v1044 = vmul.f32 %v994, %v1032
  %v1045 = vmul.f32 %v995, %v1033
  %v1046 = vadd.f32 %v1042, %v1044
  %v1047 = vadd.f32 %v1043, %v1045
  %v1048 = vtanh.pop %v1046
  %v1049 = vtanh.pop %v1047
  %v1050 = vmul.f32 %v1040, %v1048
  %v1051 = vmul.f32 %v1041, %v1049
  %v1052 = vpack.c.bf16 %v1051, %v1050
  %s1053 = scalar_lea.vmem [#allocation2], 192
  %v1054 = vld [vmem:[%s1053] sm:$0xff]
  %v1055 = vld [vmem:[%s1053 + $0x8] sm:$0xff]
  %v1056 = vld [vmem:[%s1053 + $0x10] sm:$0xff]
  %v1057 = vld [vmem:[%s1053 + $0x18] sm:$0xff]
  %v1058 = vld [vmem:[%s1053 + $0x20] sm:$0xff]
  %v1059 = vld [vmem:[%s1053 + $0x28] sm:$0xff]
  %v1060 = vld [vmem:[%s1053 + $0x30] sm:$0xff]
  %v1061 = vld [vmem:[%s1053 + $0x38] sm:$0xff]
  %1062 = vmatpush.bf16.msra.mxu0 %v642
  %1063 = vmatpush.bf16.msra.mxu0 %v640
  %1064 = vmatpush.bf16.msra.mxu0 %v638
  %1065 = vmatpush.bf16.msra.mxu0 %v636
  %1066 = vmatpush.bf16.msra.mxu0 %v634
  %1067 = vmatpush.bf16.msra.mxu0 %v632
  %1068 = vmatpush.bf16.msra.mxu0 %v630
  %1069 = vmatpush.bf16.msra.mxu0 %v628
  %1070 = vmatmul.bf16.gmra.mxu0 %v1052
  %v1071 = vpop.f32.mrf.mxu0
  %v1072 = vadd.f32 %v1054, %v1071
  %v1073 = vpop.f32.mrf.mxu0
  %v1074 = vadd.f32 %v1058, %v1073
  %1075 = vdwg.mxu0
  %1076 = vmatpush.bf16.msra.mxu0 %v643
  %1077 = vmatpush.bf16.msra.mxu0 %v641
  %1078 = vmatpush.bf16.msra.mxu0 %v639
  %1079 = vmatpush.bf16.msra.mxu0 %v637
  %1080 = vmatpush.bf16.msra.mxu0 %v635
  %1081 = vmatpush.bf16.msra.mxu0 %v633
  %1082 = vmatpush.bf16.msra.mxu0 %v631
  %1083 = vmatpush.bf16.msra.mxu0 %v629
  %1084 = vmatmul.bf16.gmra.mxu0 %v1052
  %v1085 = vpop.f32.mrf.mxu0
  %v1086 = vadd.f32 %v1055, %v1085
  %v1087 = vpop.f32.mrf.mxu0
  %v1088 = vadd.f32 %v1059, %v1087
  %1089 = vdwg.mxu0
  %v1090 = vmul.f32 %v1072, 0.5
  %v1091 = vmul.f32 %v1074, 0.5
  %v1092 = vtanh.pop %v1090
  %v1093 = vtanh.pop %v1091
  %v1094 = vmul.f32 %v1092, 0.5
  %v1095 = vmul.f32 %v1093, 0.5
  %v1096 = vadd.f32 %v1094, 0.5
  %v1097 = vadd.f32 %v1095, 0.5
  %v1098 = vmul.f32 %v1086, 0.5
  %v1099 = vmul.f32 %v1088, 0.5
  %v1100 = vtanh.pop %v1098
  %v1101 = vtanh.pop %v1099
  %v1102 = vmul.f32 %v1100, 0.5
  %v1103 = vmul.f32 %v1101, 0.5
  %v1104 = vadd.f32 %v1102, 0.5
  %v1105 = vadd.f32 %v1103, 0.5
  %1106 = vmatpush.bf16.msra.mxu0 %v782
  %1107 = vmatpush.bf16.msra.mxu0 %v780
  %1108 = vmatpush.bf16.msra.mxu0 %v778
  %1109 = vmatpush.bf16.msra.mxu0 %v776
  %1110 = vmatpush.bf16.msra.mxu0 %v774
  %1111 = vmatpush.bf16.msra.mxu0 %v772
  %1112 = vmatpush.bf16.msra.mxu0 %v770
  %1113 = vmatpush.bf16.msra.mxu0 %v768
  %1114 = vmatmul.bf16.gmra.mxu0 %v1052
  %v1115 = vpop.f32.mrf.mxu0
  %v1116 = vadd.f32 %v1056, %v1115
  %v1117 = vpop.f32.mrf.mxu0
  %v1118 = vadd.f32 %v1060, %v1117
  %1119 = vdwg.mxu0
  %1120 = vmatpush.bf16.msra.mxu0 %v783
  %1121 = vmatpush.bf16.msra.mxu0 %v781
  %1122 = vmatpush.bf16.msra.mxu0 %v779
  %1123 = vmatpush.bf16.msra.mxu0 %v777
  %1124 = vmatpush.bf16.msra.mxu0 %v775
  %1125 = vmatpush.bf16.msra.mxu0 %v773
  %1126 = vmatpush.bf16.msra.mxu0 %v771
  %1127 = vmatpush.bf16.msra.mxu0 %v769
  %1128 = vmatmul.bf16.gmra.mxu0 %v1052
  %v1129 = vpop.f32.mrf.mxu0
  %v1130 = vadd.f32 %v1057, %v1129
  %v1131 = vpop.f32.mrf.mxu0
  %v1132 = vadd.f32 %v1061, %v1131
  %1133 = vdwg.mxu0
  %v1134 = vtanh.pop %v1116
  %v1135 = vtanh.pop %v1118
  %v1136 = vmul.f32 %v1130, 0.5
  %v1137 = vmul.f32 %v1132, 0.5
  %v1138 = vtanh.pop %v1136
  %v1139 = vtanh.pop %v1137
  %v1140 = vmul.f32 %v1138, 0.5
  %v1141 = vmul.f32 %v1139, 0.5
  %v1142 = vadd.f32 %v1140, 0.5
  %v1143 = vadd.f32 %v1141, 0.5
  %v1144 = vmul.f32 %v1104, %v1046
  %v1145 = vmul.f32 %v1105, %v1047
  %v1146 = vmul.f32 %v1096, %v1134
  %v1147 = vmul.f32 %v1097, %v1135
  %v1148 = vadd.f32 %v1144, %v1146
  %v1149 = vadd.f32 %v1145, %v1147
  %v1150 = vtanh.pop %v1148
  %v1151 = vtanh.pop %v1149
  %v1152 = vmul.f32 %v1142, %v1150
  %v1153 = vmul.f32 %v1143, %v1151
  %v1154 = vpack.c.bf16 %v1153, %v1152
  %s1155 = scalar_lea.vmem [#allocation2], 256
  %v1156 = vld [vmem:[%s1155] sm:$0xff]
  %v1157 = vld [vmem:[%s1155 + $0x8] sm:$0xff]
  %v1158 = vld [vmem:[%s1155 + $0x10] sm:$0xff]
  %v1159 = vld [vmem:[%s1155 + $0x18] sm:$0xff]
  %v1160 = vld [vmem:[%s1155 + $0x20] sm:$0xff]
  %v1161 = vld [vmem:[%s1155 + $0x28] sm:$0xff]
  %v1162 = vld [vmem:[%s1155 + $0x30] sm:$0xff]
  %v1163 = vld [vmem:[%s1155 + $0x38] sm:$0xff]
  %1164 = vmatpush.bf16.msra.mxu0 %v642
  %1165 = vmatpush.bf16.msra.mxu0 %v640
  %1166 = vmatpush.bf16.msra.mxu0 %v638
  %1167 = vmatpush.bf16.msra.mxu0 %v636
  %1168 = vmatpush.bf16.msra.mxu0 %v634
  %1169 = vmatpush.bf16.msra.mxu0 %v632
  %1170 = vmatpush.bf16.msra.mxu0 %v630
  %1171 = vmatpush.bf16.msra.mxu0 %v628
  %1172 = vmatmul.bf16.gmra.mxu0 %v1154
  %v1173 = vpop.f32.mrf.mxu0
  %v1174 = vadd.f32 %v1156, %v1173
  %v1175 = vpop.f32.mrf.mxu0
  %v1176 = vadd.f32 %v1160, %v1175
  %1177 = vdwg.mxu0
  %1178 = vmatpush.bf16.msra.mxu0 %v643
  %1179 = vmatpush.bf16.msra.mxu0 %v641
  %1180 = vmatpush.bf16.msra.mxu0 %v639
  %1181 = vmatpush.bf16.msra.mxu0 %v637
  %1182 = vmatpush.bf16.msra.mxu0 %v635
  %1183 = vmatpush.bf16.msra.mxu0 %v633
  %1184 = vmatpush.bf16.msra.mxu0 %v631
  %1185 = vmatpush.bf16.msra.mxu0 %v629
  %1186 = vmatmul.bf16.gmra.mxu0 %v1154
  %v1187 = vpop.f32.mrf.mxu0
  %v1188 = vadd.f32 %v1157, %v1187
  %v1189 = vpop.f32.mrf.mxu0
  %v1190 = vadd.f32 %v1161, %v1189
  %1191 = vdwg.mxu0
  %v1192 = vmul.f32 %v1174, 0.5
  %v1193 = vmul.f32 %v1176, 0.5
  %v1194 = vtanh.pop %v1192
  %v1195 = vtanh.pop %v1193
  %v1196 = vmul.f32 %v1194, 0.5
  %v1197 = vmul.f32 %v1195, 0.5
  %v1198 = vadd.f32 %v1196, 0.5
  %v1199 = vadd.f32 %v1197, 0.5
  %v1200 = vmul.f32 %v1188, 0.5
  %v1201 = vmul.f32 %v1190, 0.5
  %v1202 = vtanh.pop %v1200
  %v1203 = vtanh.pop %v1201
  %v1204 = vmul.f32 %v1202, 0.5
  %v1205 = vmul.f32 %v1203, 0.5
  %v1206 = vadd.f32 %v1204, 0.5
  %v1207 = vadd.f32 %v1205, 0.5
  %1208 = vmatpush.bf16.msra.mxu0 %v782
  %1209 = vmatpush.bf16.msra.mxu0 %v780
  %1210 = vmatpush.bf16.msra.mxu0 %v778
  %1211 = vmatpush.bf16.msra.mxu0 %v776
  %1212 = vmatpush.bf16.msra.mxu0 %v774
  %1213 = vmatpush.bf16.msra.mxu0 %v772
  %1214 = vmatpush.bf16.msra.mxu0 %v770
  %1215 = vmatpush.bf16.msra.mxu0 %v768
  %1216 = vmatmul.bf16.gmra.mxu0 %v1154
  %v1217 = vpop.f32.mrf.mxu0
  %v1218 = vadd.f32 %v1158, %v1217
  %v1219 = vpop.f32.mrf.mxu0
  %v1220 = vadd.f32 %v1162, %v1219
  %1221 = vdwg.mxu0
  %1222 = vmatpush.bf16.msra.mxu0 %v783
  %1223 = vmatpush.bf16.msra.mxu0 %v781
  %1224 = vmatpush.bf16.msra.mxu0 %v779
  %1225 = vmatpush.bf16.msra.mxu0 %v777
  %1226 = vmatpush.bf16.msra.mxu0 %v775
  %1227 = vmatpush.bf16.msra.mxu0 %v773
  %1228 = vmatpush.bf16.msra.mxu0 %v771
  %1229 = vmatpush.bf16.msra.mxu0 %v769
  %1230 = vmatmul.bf16.gmra.mxu0 %v1154
  %v1231 = vpop.f32.mrf.mxu0
  %v1232 = vadd.f32 %v1159, %v1231
  %v1233 = vpop.f32.mrf.mxu0
  %v1234 = vadd.f32 %v1163, %v1233
  %1235 = vdwg.mxu0
  %v1236 = vtanh.pop %v1218
  %v1237 = vtanh.pop %v1220
  %v1238 = vmul.f32 %v1232, 0.5
  %v1239 = vmul.f32 %v1234, 0.5
  %v1240 = vtanh.pop %v1238
  %v1241 = vtanh.pop %v1239
  %v1242 = vmul.f32 %v1240, 0.5
  %v1243 = vmul.f32 %v1241, 0.5
  %v1244 = vadd.f32 %v1242, 0.5
  %v1245 = vadd.f32 %v1243, 0.5
  %v1246 = vmul.f32 %v1206, %v1148
  %v1247 = vmul.f32 %v1207, %v1149
  %v1248 = vmul.f32 %v1198, %v1236
  %v1249 = vmul.f32 %v1199, %v1237
  %v1250 = vadd.f32 %v1246, %v1248
  %v1251 = vadd.f32 %v1247, %v1249
  %v1252 = vtanh.pop %v1250
  %v1253 = vtanh.pop %v1251
  %v1254 = vmul.f32 %v1244, %v1252
  %v1255 = vmul.f32 %v1245, %v1253
  %v1256 = vpack.c.bf16 %v1255, %v1254
  %s1257 = scalar_lea.vmem [#allocation2], 320
  %v1258 = vld [vmem:[%s1257] sm:$0xff]
  %v1259 = vld [vmem:[%s1257 + $0x8] sm:$0xff]
  %v1260 = vld [vmem:[%s1257 + $0x10] sm:$0xff]
  %v1261 = vld [vmem:[%s1257 + $0x18] sm:$0xff]
  %v1262 = vld [vmem:[%s1257 + $0x20] sm:$0xff]
  %v1263 = vld [vmem:[%s1257 + $0x28] sm:$0xff]
  %v1264 = vld [vmem:[%s1257 + $0x30] sm:$0xff]
  %v1265 = vld [vmem:[%s1257 + $0x38] sm:$0xff]
  %1266 = vmatpush.bf16.msra.mxu0 %v642
  %1267 = vmatpush.bf16.msra.mxu0 %v640
  %1268 = vmatpush.bf16.msra.mxu0 %v638
  %1269 = vmatpush.bf16.msra.mxu0 %v636
  %1270 = vmatpush.bf16.msra.mxu0 %v634
  %1271 = vmatpush.bf16.msra.mxu0 %v632
  %1272 = vmatpush.bf16.msra.mxu0 %v630
  %1273 = vmatpush.bf16.msra.mxu0 %v628
  %1274 = vmatmul.bf16.gmra.mxu0 %v1256
  %v1275 = vpop.f32.mrf.mxu0
  %v1276 = vadd.f32 %v1258, %v1275
  %v1277 = vpop.f32.mrf.mxu0
  %v1278 = vadd.f32 %v1262, %v1277
  %1279 = vdwg.mxu0
  %1280 = vmatpush.bf16.msra.mxu0 %v643
  %1281 = vmatpush.bf16.msra.mxu0 %v641
  %1282 = vmatpush.bf16.msra.mxu0 %v639
  %1283 = vmatpush.bf16.msra.mxu0 %v637
  %1284 = vmatpush.bf16.msra.mxu0 %v635
  %1285 = vmatpush.bf16.msra.mxu0 %v633
  %1286 = vmatpush.bf16.msra.mxu0 %v631
  %1287 = vmatpush.bf16.msra.mxu0 %v629
  %1288 = vmatmul.bf16.gmra.mxu0 %v1256
  %v1289 = vpop.f32.mrf.mxu0
  %v1290 = vadd.f32 %v1259, %v1289
  %v1291 = vpop.f32.mrf.mxu0
  %v1292 = vadd.f32 %v1263, %v1291
  %1293 = vdwg.mxu0
  %v1294 = vmul.f32 %v1276, 0.5
  %v1295 = vmul.f32 %v1278, 0.5
  %v1296 = vtanh.pop %v1294
  %v1297 = vtanh.pop %v1295
  %v1298 = vmul.f32 %v1296, 0.5
  %v1299 = vmul.f32 %v1297, 0.5
  %v1300 = vadd.f32 %v1298, 0.5
  %v1301 = vadd.f32 %v1299, 0.5
  %v1302 = vmul.f32 %v1290, 0.5
  %v1303 = vmul.f32 %v1292, 0.5
  %v1304 = vtanh.pop %v1302
  %v1305 = vtanh.pop %v1303
  %v1306 = vmul.f32 %v1304, 0.5
  %v1307 = vmul.f32 %v1305, 0.5
  %v1308 = vadd.f32 %v1306, 0.5
  %v1309 = vadd.f32 %v1307, 0.5
  %1310 = vmatpush.bf16.msra.mxu0 %v782
  %1311 = vmatpush.bf16.msra.mxu0 %v780
  %1312 = vmatpush.bf16.msra.mxu0 %v778
  %1313 = vmatpush.bf16.msra.mxu0 %v776
  %1314 = vmatpush.bf16.msra.mxu0 %v774
  %1315 = vmatpush.bf16.msra.mxu0 %v772
  %1316 = vmatpush.bf16.msra.mxu0 %v770
  %1317 = vmatpush.bf16.msra.mxu0 %v768
  %1318 = vmatmul.bf16.gmra.mxu0 %v1256
  %v1319 = vpop.f32.mrf.mxu0
  %v1320 = vadd.f32 %v1260, %v1319
  %v1321 = vpop.f32.mrf.mxu0
  %v1322 = vadd.f32 %v1264, %v1321
  %1323 = vdwg.mxu0
  %1324 = vmatpush.bf16.msra.mxu0 %v783
  %1325 = vmatpush.bf16.msra.mxu0 %v781
  %1326 = vmatpush.bf16.msra.mxu0 %v779
  %1327 = vmatpush.bf16.msra.mxu0 %v777
  %1328 = vmatpush.bf16.msra.mxu0 %v775
  %1329 = vmatpush.bf16.msra.mxu0 %v773
  %1330 = vmatpush.bf16.msra.mxu0 %v771
  %1331 = vmatpush.bf16.msra.mxu0 %v769
  %1332 = vmatmul.bf16.gmra.mxu0 %v1256
  %v1333 = vpop.f32.mrf.mxu0
  %v1334 = vadd.f32 %v1261, %v1333
  %v1335 = vpop.f32.mrf.mxu0
  %v1336 = vadd.f32 %v1265, %v1335
  %1337 = vdwg.mxu0
  %v1338 = vtanh.pop %v1320
  %v1339 = vtanh.pop %v1322
  %v1340 = vmul.f32 %v1334, 0.5
  %v1341 = vmul.f32 %v1336, 0.5
  %v1342 = vtanh.pop %v1340
  %v1343 = vtanh.pop %v1341
  %v1344 = vmul.f32 %v1342, 0.5
  %v1345 = vmul.f32 %v1343, 0.5
  %v1346 = vadd.f32 %v1344, 0.5
  %v1347 = vadd.f32 %v1345, 0.5
  %v1348 = vmul.f32 %v1308, %v1250
  %v1349 = vmul.f32 %v1309, %v1251
  %v1350 = vmul.f32 %v1300, %v1338
  %v1351 = vmul.f32 %v1301, %v1339
  %v1352 = vadd.f32 %v1348, %v1350
  %v1353 = vadd.f32 %v1349, %v1351
  %v1354 = vtanh.pop %v1352
  %v1355 = vtanh.pop %v1353
  %v1356 = vmul.f32 %v1346, %v1354
  %v1357 = vmul.f32 %v1347, %v1355
  %v1358 = vpack.c.bf16 %v1357, %v1356
  %s1359 = scalar_lea.vmem [#allocation2], 384
  %v1360 = vld [vmem:[%s1359] sm:$0xff]
  %v1361 = vld [vmem:[%s1359 + $0x8] sm:$0xff]
  %v1362 = vld [vmem:[%s1359 + $0x10] sm:$0xff]
  %v1363 = vld [vmem:[%s1359 + $0x18] sm:$0xff]
  %v1364 = vld [vmem:[%s1359 + $0x20] sm:$0xff]
  %v1365 = vld [vmem:[%s1359 + $0x28] sm:$0xff]
  %v1366 = vld [vmem:[%s1359 + $0x30] sm:$0xff]
  %v1367 = vld [vmem:[%s1359 + $0x38] sm:$0xff]
  %1368 = vmatpush.bf16.msra.mxu0 %v642
  %1369 = vmatpush.bf16.msra.mxu0 %v640
  %1370 = vmatpush.bf16.msra.mxu0 %v638
  %1371 = vmatpush.bf16.msra.mxu0 %v636
  %1372 = vmatpush.bf16.msra.mxu0 %v634
  %1373 = vmatpush.bf16.msra.mxu0 %v632
  %1374 = vmatpush.bf16.msra.mxu0 %v630
  %1375 = vmatpush.bf16.msra.mxu0 %v628
  %1376 = vmatmul.bf16.gmra.mxu0 %v1358
  %v1377 = vpop.f32.mrf.mxu0
  %v1378 = vadd.f32 %v1360, %v1377
  %v1379 = vpop.f32.mrf.mxu0
  %v1380 = vadd.f32 %v1364, %v1379
  %1381 = vdwg.mxu0
  %1382 = vmatpush.bf16.msra.mxu0 %v643
  %1383 = vmatpush.bf16.msra.mxu0 %v641
  %1384 = vmatpush.bf16.msra.mxu0 %v639
  %1385 = vmatpush.bf16.msra.mxu0 %v637
  %1386 = vmatpush.bf16.msra.mxu0 %v635
  %1387 = vmatpush.bf16.msra.mxu0 %v633
  %1388 = vmatpush.bf16.msra.mxu0 %v631
  %1389 = vmatpush.bf16.msra.mxu0 %v629
  %1390 = vmatmul.bf16.gmra.mxu0 %v1358
  %v1391 = vpop.f32.mrf.mxu0
  %v1392 = vadd.f32 %v1361, %v1391
  %v1393 = vpop.f32.mrf.mxu0
  %v1394 = vadd.f32 %v1365, %v1393
  %1395 = vdwg.mxu0
  %v1396 = vmul.f32 %v1378, 0.5
  %v1397 = vmul.f32 %v1380, 0.5
  %v1398 = vtanh.pop %v1396
  %v1399 = vtanh.pop %v1397
  %v1400 = vmul.f32 %v1398, 0.5
  %v1401 = vmul.f32 %v1399, 0.5
  %v1402 = vadd.f32 %v1400, 0.5
  %v1403 = vadd.f32 %v1401, 0.5
  %v1404 = vmul.f32 %v1392, 0.5
  %v1405 = vmul.f32 %v1394, 0.5
  %v1406 = vtanh.pop %v1404
  %v1407 = vtanh.pop %v1405
  %v1408 = vmul.f32 %v1406, 0.5
  %v1409 = vmul.f32 %v1407, 0.5
  %v1410 = vadd.f32 %v1408, 0.5
  %v1411 = vadd.f32 %v1409, 0.5
  %1412 = vmatpush.bf16.msra.mxu0 %v782
  %1413 = vmatpush.bf16.msra.mxu0 %v780
  %1414 = vmatpush.bf16.msra.mxu0 %v778
  %1415 = vmatpush.bf16.msra.mxu0 %v776
  %1416 = vmatpush.bf16.msra.mxu0 %v774
  %1417 = vmatpush.bf16.msra.mxu0 %v772
  %1418 = vmatpush.bf16.msra.mxu0 %v770
  %1419 = vmatpush.bf16.msra.mxu0 %v768
  %1420 = vmatmul.bf16.gmra.mxu0 %v1358
  %v1421 = vpop.f32.mrf.mxu0
  %v1422 = vadd.f32 %v1362, %v1421
  %v1423 = vpop.f32.mrf.mxu0
  %v1424 = vadd.f32 %v1366, %v1423
  %1425 = vdwg.mxu0
  %1426 = vmatpush.bf16.msra.mxu0 %v783
  %1427 = vmatpush.bf16.msra.mxu0 %v781
  %1428 = vmatpush.bf16.msra.mxu0 %v779
  %1429 = vmatpush.bf16.msra.mxu0 %v777
  %1430 = vmatpush.bf16.msra.mxu0 %v775
  %1431 = vmatpush.bf16.msra.mxu0 %v773
  %1432 = vmatpush.bf16.msra.mxu0 %v771
  %1433 = vmatpush.bf16.msra.mxu0 %v769
  %1434 = vmatmul.bf16.gmra.mxu0 %v1358
  %v1435 = vpop.f32.mrf.mxu0
  %v1436 = vadd.f32 %v1363, %v1435
  %v1437 = vpop.f32.mrf.mxu0
  %v1438 = vadd.f32 %v1367, %v1437
  %1439 = vdwg.mxu0
  %v1440 = vtanh.pop %v1422
  %v1441 = vtanh.pop %v1424
  %v1442 = vmul.f32 %v1436, 0.5
  %v1443 = vmul.f32 %v1438, 0.5
  %v1444 = vtanh.pop %v1442
  %v1445 = vtanh.pop %v1443
  %v1446 = vmul.f32 %v1444, 0.5
  %v1447 = vmul.f32 %v1445, 0.5
  %v1448 = vadd.f32 %v1446, 0.5
  %v1449 = vadd.f32 %v1447, 0.5
  %v1450 = vmul.f32 %v1410, %v1352
  %v1451 = vmul.f32 %v1411, %v1353
  %v1452 = vmul.f32 %v1402, %v1440
  %v1453 = vmul.f32 %v1403, %v1441
  %v1454 = vadd.f32 %v1450, %v1452
  %v1455 = vadd.f32 %v1451, %v1453
  %v1456 = vtanh.pop %v1454
  %v1457 = vtanh.pop %v1455
  %v1458 = vmul.f32 %v1448, %v1456
  %v1459 = vmul.f32 %v1449, %v1457
  %v1460 = vpack.c.bf16 %v1459, %v1458
  %s1461 = scalar_lea.vmem [#allocation2], 448
  %v1462 = vld [vmem:[%s1461] sm:$0xff]
  %v1463 = vld [vmem:[%s1461 + $0x8] sm:$0xff]
  %v1464 = vld [vmem:[%s1461 + $0x10] sm:$0xff]
  %v1465 = vld [vmem:[%s1461 + $0x18] sm:$0xff]
  %v1466 = vld [vmem:[%s1461 + $0x20] sm:$0xff]
  %v1467 = vld [vmem:[%s1461 + $0x28] sm:$0xff]
  %v1468 = vld [vmem:[%s1461 + $0x30] sm:$0xff]
  %v1469 = vld [vmem:[%s1461 + $0x38] sm:$0xff]
  %1470 = vmatpush.bf16.msra.mxu0 %v642
  %1471 = vmatpush.bf16.msra.mxu0 %v640
  %1472 = vmatpush.bf16.msra.mxu0 %v638
  %1473 = vmatpush.bf16.msra.mxu0 %v636
  %1474 = vmatpush.bf16.msra.mxu0 %v634
  %1475 = vmatpush.bf16.msra.mxu0 %v632
  %1476 = vmatpush.bf16.msra.mxu0 %v630
  %1477 = vmatpush.bf16.msra.mxu0 %v628
  %1478 = vmatmul.bf16.gmra.mxu0 %v1460
  %v1479 = vpop.f32.mrf.mxu0
  %v1480 = vadd.f32 %v1462, %v1479
  %v1481 = vpop.f32.mrf.mxu0
  %v1482 = vadd.f32 %v1466, %v1481
  %1483 = vdwg.mxu0
  %1484 = vmatpush.bf16.msra.mxu0 %v643
  %1485 = vmatpush.bf16.msra.mxu0 %v641
  %1486 = vmatpush.bf16.msra.mxu0 %v639
  %1487 = vmatpush.bf16.msra.mxu0 %v637
  %1488 = vmatpush.bf16.msra.mxu0 %v635
  %1489 = vmatpush.bf16.msra.mxu0 %v633
  %1490 = vmatpush.bf16.msra.mxu0 %v631
  %1491 = vmatpush.bf16.msra.mxu0 %v629
  %1492 = vmatmul.bf16.gmra.mxu0 %v1460
  %v1493 = vpop.f32.mrf.mxu0
  %v1494 = vadd.f32 %v1463, %v1493
  %v1495 = vpop.f32.mrf.mxu0
  %v1496 = vadd.f32 %v1467, %v1495
  %1497 = vdwg.mxu0
  %v1498 = vmul.f32 %v1480, 0.5
  %v1499 = vmul.f32 %v1482, 0.5
  %v1500 = vtanh.pop %v1498
  %v1501 = vtanh.pop %v1499
  %v1502 = vmul.f32 %v1500, 0.5
  %v1503 = vmul.f32 %v1501, 0.5
  %v1504 = vadd.f32 %v1502, 0.5
  %v1505 = vadd.f32 %v1503, 0.5
  %v1506 = vmul.f32 %v1494, 0.5
  %v1507 = vmul.f32 %v1496, 0.5
  %v1508 = vtanh.pop %v1506
  %v1509 = vtanh.pop %v1507
  %v1510 = vmul.f32 %v1508, 0.5
  %v1511 = vmul.f32 %v1509, 0.5
  %v1512 = vadd.f32 %v1510, 0.5
  %v1513 = vadd.f32 %v1511, 0.5
  %1514 = vmatpush.bf16.msra.mxu0 %v782
  %1515 = vmatpush.bf16.msra.mxu0 %v780
  %1516 = vmatpush.bf16.msra.mxu0 %v778
  %1517 = vmatpush.bf16.msra.mxu0 %v776
  %1518 = vmatpush.bf16.msra.mxu0 %v774
  %1519 = vmatpush.bf16.msra.mxu0 %v772
  %1520 = vmatpush.bf16.msra.mxu0 %v770
  %1521 = vmatpush.bf16.msra.mxu0 %v768
  %1522 = vmatmul.bf16.gmra.mxu0 %v1460
  %v1523 = vpop.f32.mrf.mxu0
  %v1524 = vadd.f32 %v1464, %v1523
  %v1525 = vpop.f32.mrf.mxu0
  %v1526 = vadd.f32 %v1468, %v1525
  %1527 = vdwg.mxu0
  %1528 = vmatpush.bf16.msra.mxu0 %v783
  %1529 = vmatpush.bf16.msra.mxu0 %v781
  %1530 = vmatpush.bf16.msra.mxu0 %v779
  %1531 = vmatpush.bf16.msra.mxu0 %v777
  %1532 = vmatpush.bf16.msra.mxu0 %v775
  %1533 = vmatpush.bf16.msra.mxu0 %v773
  %1534 = vmatpush.bf16.msra.mxu0 %v771
  %1535 = vmatpush.bf16.msra.mxu0 %v769
  %1536 = vmatmul.bf16.gmra.mxu0 %v1460
  %v1537 = vpop.f32.mrf.mxu0
  %v1538 = vadd.f32 %v1465, %v1537
  %v1539 = vpop.f32.mrf.mxu0
  %v1540 = vadd.f32 %v1469, %v1539
  %1541 = vdwg.mxu0
  %v1542 = vtanh.pop %v1524
  %v1543 = vtanh.pop %v1526
  %v1544 = vmul.f32 %v1538, 0.5
  %v1545 = vmul.f32 %v1540, 0.5
  %v1546 = vtanh.pop %v1544
  %v1547 = vtanh.pop %v1545
  %v1548 = vmul.f32 %v1546, 0.5
  %v1549 = vmul.f32 %v1547, 0.5
  %v1550 = vadd.f32 %v1548, 0.5
  %v1551 = vadd.f32 %v1549, 0.5
  %v1552 = vmul.f32 %v1512, %v1454
  %v1553 = vmul.f32 %v1513, %v1455
  %v1554 = vmul.f32 %v1504, %v1542
  %v1555 = vmul.f32 %v1505, %v1543
  %v1556 = vadd.f32 %v1552, %v1554
  %v1557 = vadd.f32 %v1553, %v1555
  %v1558 = vtanh.pop %v1556
  %v1559 = vtanh.pop %v1557
  %v1560 = vmul.f32 %v1550, %v1558
  %v1561 = vmul.f32 %v1551, %v1559
  %v1562 = vpack.c.bf16 %v1561, %v1560
  %v1563 = vld [vmem:[%s4] sm:$0xff]
  %v1564 = vld [vmem:[%s4 + $0x8] sm:$0xff]
  %v1565 = vld [vmem:[%s4 + $0x10] sm:$0xff]
  %v1566 = vld [vmem:[%s4 + $0x18] sm:$0xff]
  %v1567 = vld [vmem:[%s4 + $0x20] sm:$0xff]
  %v1568 = vld [vmem:[%s4 + $0x28] sm:$0xff]
  %v1569 = vld [vmem:[%s4 + $0x30] sm:$0xff]
  %v1570 = vld [vmem:[%s4 + $0x38] sm:$0xff]
  %v1571 = vld [vmem:[%s4 + $0x40] sm:$0xff]
  %v1572 = vld [vmem:[%s4 + $0x48] sm:$0xff]
  %v1573 = vld [vmem:[%s4 + $0x50] sm:$0xff]
  %v1574 = vld [vmem:[%s4 + $0x58] sm:$0xff]
  %v1575 = vld [vmem:[%s4 + $0x60] sm:$0xff]
  %v1576 = vld [vmem:[%s4 + $0x68] sm:$0xff]
  %v1577 = vld [vmem:[%s4 + $0x70] sm:$0xff]
  %v1578 = vld [vmem:[%s4 + $0x78] sm:$0xff]
  %v1579 = vld [vmem:[%s5] sm:$0x3]
  %v1581 = vperm.slane %v1579, 0
  %v1582 = vperm.slane %v1579, 1
  %v1601 = vunpack.c.l.b16 %v1563
  %v1602 = vunpack.c.h.b16 %v1563
  %v1603 = vunpack.c.l.b16 %v1564
  %v1604 = vunpack.c.h.b16 %v1564
  %v1605 = vunpack.c.l.b16 %v1565
  %v1606 = vunpack.c.h.b16 %v1565
  %v1607 = vunpack.c.l.b16 %v1566
  %v1608 = vunpack.c.h.b16 %v1566
  %v1609 = vunpack.c.l.b16 %v1567
  %v1610 = vunpack.c.h.b16 %v1567
  %v1611 = vunpack.c.l.b16 %v1568
  %v1612 = vunpack.c.h.b16 %v1568
  %v1613 = vunpack.c.l.b16 %v1569
  %v1614 = vunpack.c.h.b16 %v1569
  %v1615 = vunpack.c.l.b16 %v1570
  %v1616 = vunpack.c.h.b16 %v1570
  %v1617 = vunpack.c.l.b16 %v1571
  %v1618 = vunpack.c.h.b16 %v1571
  %v1619 = vunpack.c.l.b16 %v1572
  %v1620 = vunpack.c.h.b16 %v1572
  %v1621 = vunpack.c.l.b16 %v1573
  %v1622 = vunpack.c.h.b16 %v1573
  %v1623 = vunpack.c.l.b16 %v1574
  %v1624 = vunpack.c.h.b16 %v1574
  %v1625 = vunpack.c.l.b16 %v1575
  %v1626 = vunpack.c.h.b16 %v1575
  %v1627 = vunpack.c.l.b16 %v1576
  %v1628 = vunpack.c.h.b16 %v1576
  %v1629 = vunpack.c.l.b16 %v1577
  %v1630 = vunpack.c.h.b16 %v1577
  %v1631 = vunpack.c.l.b16 %v1578
  %v1632 = vunpack.c.h.b16 %v1578
  %v1633 = vpack.c.b16 %v1603, %v1601
  %v1634 = vpack.c.b16 %v1604, %v1602
  %v1635 = vpack.c.b16 %v1607, %v1605
  %v1636 = vpack.c.b16 %v1608, %v1606
  %v1637 = vpack.c.b16 %v1611, %v1609
  %v1638 = vpack.c.b16 %v1612, %v1610
  %v1639 = vpack.c.b16 %v1615, %v1613
  %v1640 = vpack.c.b16 %v1616, %v1614
  %v1641 = vpack.c.b16 %v1619, %v1617
  %v1642 = vpack.c.b16 %v1620, %v1618
  %v1643 = vpack.c.b16 %v1623, %v1621
  %v1644 = vpack.c.b16 %v1624, %v1622
  %v1645 = vpack.c.b16 %v1627, %v1625
  %v1646 = vpack.c.b16 %v1628, %v1626
  %v1647 = vpack.c.b16 %v1631, %v1629
  %v1648 = vpack.c.b16 %v1632, %v1630
  %1665 = vmatpush.bf16.msra.mxu0 %v1647
  %1666 = vmatpush.bf16.msra.mxu0 %v1645
  %1667 = vmatpush.bf16.msra.mxu0 %v1643
  %1668 = vmatpush.bf16.msra.mxu0 %v1641
  %1669 = vmatpush.bf16.msra.mxu0 %v1639
  %1670 = vmatpush.bf16.msra.mxu0 %v1637
  %1671 = vmatpush.bf16.msra.mxu0 %v1635
  %1672 = vmatpush.bf16.msra.mxu0 %v1633
  %1673 = vmatmul.bf16.gmra.mxu0 %v1562
  %v1674 = vpop.f32.mrf.mxu0
  %v1675 = vadd.f32 %v1581, %v1674
  %v1676 = vpop.f32.mrf.mxu0
  %v1677 = vadd.f32 %v1581, %v1676
  %1678 = vdwg.mxu0
  %1679 = vmatpush.bf16.msra.mxu0 %v1648
  %1680 = vmatpush.bf16.msra.mxu0 %v1646
  %1681 = vmatpush.bf16.msra.mxu0 %v1644
  %1682 = vmatpush.bf16.msra.mxu0 %v1642
  %1683 = vmatpush.bf16.msra.mxu0 %v1640
  %1684 = vmatpush.bf16.msra.mxu0 %v1638
  %1685 = vmatpush.bf16.msra.mxu0 %v1636
  %1686 = vmatpush.bf16.msra.mxu0 %v1634
  %1687 = vmatmul.bf16.gmra.mxu0 %v1562
  %v1688 = vpop.f32.mrf.mxu0
  %v1689 = vadd.f32 %v1582, %v1688
  %v1690 = vpop.f32.mrf.mxu0
  %v1691 = vadd.f32 %v1582, %v1690
  %1692 = vdwg.mxu0
  %v1693 = vpack.c.bf16 %v1677, %v1675
  %v1694 = vpack.c.bf16 %v1691, %v1689
  %v1695 = vld [vmem:[%s6] sm:$0xf]
  %v1696 = vld [vmem:[%s6 + $0x4] sm:$0xf]
  %v1697 = vld [vmem:[%s6 + $0x8] sm:$0xf]
  %v1698 = vld [vmem:[%s6 + $0xc] sm:$0xf]
  %v1699 = vld [vmem:[%s6 + $0x10] sm:$0xf]
  %v1700 = vld [vmem:[%s6 + $0x14] sm:$0xf]
  %v1701 = vld [vmem:[%s6 + $0x18] sm:$0xf]
  %v1702 = vld [vmem:[%s6 + $0x1c] sm:$0xf]
  %v1703 = vld [vmem:[%s6 + $0x20] sm:$0xf]
  %v1704 = vld [vmem:[%s6 + $0x24] sm:$0xf]
  %v1705 = vld [vmem:[%s6 + $0x28] sm:$0xf]
  %v1706 = vld [vmem:[%s6 + $0x2c] sm:$0xf]
  %v1707 = vld [vmem:[%s6 + $0x30] sm:$0xf]
  %v1708 = vld [vmem:[%s6 + $0x34] sm:$0xf]
  %v1709 = vld [vmem:[%s6 + $0x38] sm:$0xf]
  %v1710 = vld [vmem:[%s6 + $0x3c] sm:$0xf]
  %v1711 = vld [vmem:[%s6 + $0x40] sm:$0xf]
  %v1712 = vld [vmem:[%s6 + $0x44] sm:$0xf]
  %v1713 = vld [vmem:[%s6 + $0x48] sm:$0xf]
  %v1714 = vld [vmem:[%s6 + $0x4c] sm:$0xf]
  %v1715 = vld [vmem:[%s6 + $0x50] sm:$0xf]
  %v1716 = vld [vmem:[%s6 + $0x54] sm:$0xf]
  %v1717 = vld [vmem:[%s6 + $0x58] sm:$0xf]
  %v1718 = vld [vmem:[%s6 + $0x5c] sm:$0xf]
  %v1719 = vld [vmem:[%s6 + $0x60] sm:$0xf]
  %v1720 = vld [vmem:[%s6 + $0x64] sm:$0xf]
  %v1721 = vld [vmem:[%s6 + $0x68] sm:$0xf]
  %v1722 = vld [vmem:[%s6 + $0x6c] sm:$0xf]
  %v1723 = vld [vmem:[%s6 + $0x70] sm:$0xf]
  %v1724 = vld [vmem:[%s6 + $0x74] sm:$0xf]
  %v1725 = vld [vmem:[%s6 + $0x78] sm:$0xf]
  %v1726 = vld [vmem:[%s6 + $0x7c] sm:$0xf]
  %v1727 = vld [vmem:[%s7] sm:$0x1]
  %v1729 = vperm.slane %v1727, 0
  %v1763 = vunpack.c.l.b16 %v1695
  %v1764 = vunpack.c.l.b16 %v1696
  %v1765 = vunpack.c.l.b16 %v1697
  %v1766 = vunpack.c.l.b16 %v1698
  %v1767 = vunpack.c.l.b16 %v1699
  %v1768 = vunpack.c.l.b16 %v1700
  %v1769 = vunpack.c.l.b16 %v1701
  %v1770 = vunpack.c.l.b16 %v1702
  %v1771 = vunpack.c.l.b16 %v1703
  %v1772 = vunpack.c.l.b16 %v1704
  %v1773 = vunpack.c.l.b16 %v1705
  %v1774 = vunpack.c.l.b16 %v1706
  %v1775 = vunpack.c.l.b16 %v1707
  %v1776 = vunpack.c.l.b16 %v1708
  %v1777 = vunpack.c.l.b16 %v1709
  %v1778 = vunpack.c.l.b16 %v1710
  %v1779 = vunpack.c.l.b16 %v1711
  %v1780 = vunpack.c.l.b16 %v1712
  %v1781 = vunpack.c.l.b16 %v1713
  %v1782 = vunpack.c.l.b16 %v1714
  %v1783 = vunpack.c.l.b16 %v1715
  %v1784 = vunpack.c.l.b16 %v1716
  %v1785 = vunpack.c.l.b16 %v1717
  %v1786 = vunpack.c.l.b16 %v1718
  %v1787 = vunpack.c.l.b16 %v1719
  %v1788 = vunpack.c.l.b16 %v1720
  %v1789 = vunpack.c.l.b16 %v1721
  %v1790 = vunpack.c.l.b16 %v1722
  %v1791 = vunpack.c.l.b16 %v1723
  %v1792 = vunpack.c.l.b16 %v1724
  %v1793 = vunpack.c.l.b16 %v1725
  %v1794 = vunpack.c.l.b16 %v1726
  %v1795 = vpack.c.b16 %v1764, %v1763
  %v1796 = vpack.c.b16 %v1766, %v1765
  %v1797 = vpack.c.b16 %v1768, %v1767
  %v1798 = vpack.c.b16 %v1770, %v1769
  %v1799 = vpack.c.b16 %v1772, %v1771
  %v1800 = vpack.c.b16 %v1774, %v1773
  %v1801 = vpack.c.b16 %v1776, %v1775
  %v1802 = vpack.c.b16 %v1778, %v1777
  %v1803 = vpack.c.b16 %v1780, %v1779
  %v1804 = vpack.c.b16 %v1782, %v1781
  %v1805 = vpack.c.b16 %v1784, %v1783
  %v1806 = vpack.c.b16 %v1786, %v1785
  %v1807 = vpack.c.b16 %v1788, %v1787
  %v1808 = vpack.c.b16 %v1790, %v1789
  %v1809 = vpack.c.b16 %v1792, %v1791
  %v1810 = vpack.c.b16 %v1794, %v1793
  %1827 = vmatpush.bf16.msra.mxu0 %v1802
  %1828 = vmatpush.bf16.msra.mxu0 %v1801
  %1829 = vmatpush.bf16.msra.mxu0 %v1800
  %1830 = vmatpush.bf16.msra.mxu0 %v1799
  %1831 = vmatpush.bf16.msra.mxu0 %v1798
  %1832 = vmatpush.bf16.msra.mxu0 %v1797
  %1833 = vmatpush.bf16.msra.mxu0 %v1796
  %1834 = vmatpush.bf16.msra.mxu0 %v1795
  %1835 = vmatmul.bf16.gmra.mxu0 %v1693
  %v1836 = vpop.f32.mrf.mxu0
  %v1837 = vadd.f32 %v1729, %v1836
  %v1838 = vpop.f32.mrf.mxu0
  %v1839 = vadd.f32 %v1729, %v1838
  %1840 = vdwg.mxu0
  %1841 = vmatpush.bf16.msra.mxu0 %v1810
  %1842 = vmatpush.bf16.msra.mxu0 %v1809
  %1843 = vmatpush.bf16.msra.mxu0 %v1808
  %1844 = vmatpush.bf16.msra.mxu0 %v1807
  %1845 = vmatpush.bf16.msra.mxu0 %v1806
  %1846 = vmatpush.bf16.msra.mxu0 %v1805
  %1847 = vmatpush.bf16.msra.mxu0 %v1804
  %1848 = vmatpush.bf16.msra.mxu0 %v1803
  %1849 = vmatmul.bf16.gmra.mxu0 %v1694
  %v1850 = vpop.f32.mrf.mxu0
  %v1851 = vadd.f32 %v1837, %v1850
  %v1852 = vpop.f32.mrf.mxu0
  %v1853 = vadd.f32 %v1839, %v1852
  %1854 = vdwg.mxu0
  %1855 = vst [vmem:[%s8] sm:$0xff] %v1851
  %1856 = vst [vmem:[%s8 + $0x8] sm:$0xff] %v1853
  // Predicated region
  $region34: #{rnnet_forward.1} parent=0 // pred_check
    _
  $region35: #{rnnet_forward.1} parent=0 // pred_check_branch
    %1858 = sbr.rel (0) target = $region37
  $region36: #{rnnet_forward.1} parent=0 // pred_region
    _
  $region37: #{rnnet_forward.1} parent=0 // pred_fallthru
    _
  // Predicated region
  $region38: #{rnnet_forward.1} parent=0 // pred_check
    _
  $region39: #{rnnet_forward.1} parent=0 // pred_check_branch
    %1860 = sbr.rel (0) target = $region41
  $region40: #{rnnet_forward.1} parent=0 // pred_region
    _
  $region41: #{rnnet_forward.1} parent=0 // pred_fallthru
    _

</llo_original>
